<compile_context>
chip_gen: v7x
topology: tpu7x:2x2x1
jax: 0.10.0
libtpu: 0.0.40
codegen_flags: <defaults>
</compile_context>

<pallas_src>
import functools

import jax
import jax.numpy as jnp
from jax import lax
from jax.experimental import pallas as pl
from jax.experimental.pallas import tpu as pltpu


def _lstm_predictor_kernel(x_ref, pre_w_ref, pre_b_ref,
                           wih_ref, whh_ref, b_ref,
                           fc_w_ref, fc_b_ref, h0_ref, c0_ref,
                           out_ref, hn_ref, cn_ref,
                           xg_ref,
                           *, n_layers, seq_len, batch, hidden_dim):
    L, T, B, H = n_layers, seq_len, batch, hidden_dim
    bf16, f32 = jnp.bfloat16, jnp.float32

    # ---- pre_fc + ReLU over the whole sequence (one big matmul), then hoist
    # layer-0's input-side gates (+ folded bias) for every timestep at once.
    xp = jnp.dot(x_ref[...], pre_w_ref[...], preferred_element_type=f32)   # (T*B, H)
    x_act = jax.nn.relu(xp + pre_b_ref[...]).astype(bf16)                   # (T*B, H) bf16
    xg_ref[...] = (jnp.dot(x_act, wih_ref[0], preferred_element_type=f32)
                   + b_ref[0])                                              # (T*B, 4H) f32

    # Hoist per-layer weights/biases into values once (outside all loops).
    w_ih = [wih_ref[l] for l in range(L)]     # (H, 4H) bf16 (layer 0 unused per-step)
    w_hh = [whh_ref[l] for l in range(L)]     # (H, 4H) bf16
    bias = [b_ref[l] for l in range(L)]       # (1, 4H) f32 (b_ih + b_hh, g cols x2)

    def cell(gates, c):
        # gates: (B, 4H) f32 pre-activations; g columns were pre-scaled by 2 in
        # the wrapper so tanh(z) == 2*sigmoid(2z) - 1 falls out of one sigmoid.
        sig = jax.nn.sigmoid(gates)                      # single full-lane EUP op
        i_g = sig[:, 0 * H:1 * H]
        f_g = sig[:, 1 * H:2 * H]
        g_g = 2.0 * sig[:, 2 * H:3 * H] - 1.0            # == tanh(original g pre-act)
        o_g = sig[:, 3 * H:4 * H]
        c_new = f_g * c + i_g * g_g
        h_new = o_g * jnp.tanh(c_new)
        return h_new, c_new

    def layer_step(l, t, prev_hs, h, c):
        """One LSTM cell update of layer `l` at time `t` (t static or traced)."""
        rec = jnp.dot(h.astype(bf16), w_hh[l], preferred_element_type=f32)  # (B,4H)
        if l == 0:
            idx = t * B
            if not isinstance(idx, int):
                idx = pl.multiple_of(idx, B)
            gates = xg_ref[pl.ds(idx, B), :] + rec
        else:
            # Input is layer l-1's hidden state from the previous wavefront step
            # (i.e. its output at the same time index t) — handed off via vregs.
            inp = jnp.dot(prev_hs[l - 1].astype(bf16), w_ih[l],
                          preferred_element_type=f32)
            gates = inp + rec + bias[l]
        return cell(gates, c)

    def wavefront_step(s, hs, cs, active):
        """Advance the `active` layers by one wavefront step (layer l at t=s-l).

        All active layers read the *snapshot* `hs`, so their matmuls are
        mutually independent and can be overlapped by the scheduler/MXU.
        """
        new_hs, new_cs = list(hs), list(cs)
        for l in active:
            new_hs[l], new_cs[l] = layer_step(l, s - l, hs, hs[l], cs[l])
        return tuple(new_hs), tuple(new_cs)

    hs = tuple(h0_ref[l] for l in range(L))
    cs = tuple(c0_ref[l] for l in range(L))

    # ---- prologue: ramp the wavefront up (static, at most L-1 steps) ----
    for s in range(min(L - 1, T + L - 1)):
        active = [l for l in range(L) if 0 <= s - l < T]
        hs, cs = wavefront_step(s, hs, cs, active)

    # ---- steady state: all L layers advance concurrently ----
    n_steady = T - L + 1
    if n_steady > 0:
        def body(s, carry):
            hs_c, cs_c = carry
            return wavefront_step(s, hs_c, cs_c, active=range(L))

        hs, cs = lax.fori_loop(L - 1, T, body, (hs, cs),
                               unroll=min(8, n_steady))   # bounded unroll

    # ---- epilogue: drain the trailing layers (static, at most L-1 steps) ----
    for s in range(T, T + L - 1):
        active = [l for l in range(L) if 0 <= s - l < T]
        hs, cs = wavefront_step(s, hs, cs, active)

    for l in range(L):
        hn_ref[l] = hs[l]
        cn_ref[l] = cs[l]

    # fc on the last timestep of the top layer (== h_n of the top layer).
    out_ref[...] = (jnp.dot(hs[L - 1].astype(bf16), fc_w_ref[...],
                            preferred_element_type=f32)
                    + fc_b_ref[...])


def lstm_predictor_forward(x, params, h0, c0):
    B, T, Din = x.shape
    L, _, H = params['w_ih'].shape                    # (L, 4H, H) PyTorch layout
    O = params['fc_w'].shape[0]
    f32, bf16 = jnp.float32, jnp.bfloat16

    # x2 fold on the g (cell-candidate) gate columns so the kernel can use
    # tanh(z) = 2*sigmoid(2z) - 1 with a single full-width sigmoid per step.
    g_scale = jnp.concatenate([jnp.ones((2 * H,), f32),
                               2.0 * jnp.ones((H,), f32),
                               jnp.ones((H,), f32)])          # (4H,), order [i,f,g,o]

    # Pre-transpose weights into (K, N), fold the two LSTM biases, cast to bf16
    # (accumulation and gate/cell math stay f32 inside the kernel).
    pre_w_t = params['pre_w'].T.astype(bf16)                               # (Din, H)
    w_ih_t = (jnp.transpose(params['w_ih'], (0, 2, 1))
              * g_scale[None, None, :]).astype(bf16)                       # (L, H, 4H)
    w_hh_t = (jnp.transpose(params['w_hh'], (0, 2, 1))
              * g_scale[None, None, :]).astype(bf16)                       # (L, H, 4H)
    bias = ((params['b_ih'] + params['b_hh'])
            * g_scale[None, None, :]).astype(f32)                          # (L, 1, 4H)
    fc_w_t = params['fc_w'].T.astype(bf16)                                 # (H, O)

    # Time-major flattened input: row t*B + b holds sample (b, t).
    # TODO(synk): at scale, fold this relayout into an input BlockSpec index_map
    # instead of an extra XLA transpose pass over x.
    x_tm = jnp.transpose(x, (1, 0, 2)).reshape(T * B, Din).astype(bf16)

    kernel = functools.partial(_lstm_predictor_kernel,
                               n_layers=L, seq_len=T, batch=B, hidden_dim=H)
    vmem = pl.BlockSpec(memory_space=pltpu.MemorySpace.VMEM)

    out_shapes = (jax.ShapeDtypeStruct((B, O), f32),      # fc output
                  jax.ShapeDtypeStruct((L, B, H), f32),   # h_n
                  jax.ShapeDtypeStruct((L, B, H), f32))   # c_n

    out, hn, cn = pl.pallas_call(
        kernel,
        out_shape=out_shapes,
        in_specs=[vmem] * 10,
        out_specs=(vmem, vmem, vmem),
        scratch_shapes=[pltpu.VMEM((T * B, 4 * H), f32)],   # hoisted layer-0 gates
        compiler_params=pltpu.CompilerParams(vmem_limit_bytes=32 * 1024 * 1024),
    )(x_tm, pre_w_t, params['pre_b'].astype(f32), w_ih_t, w_hh_t, bias,
      fc_w_t, params['fc_b'].astype(f32), h0, c0)
    return out, (hn, cn)


def _reference_forward(x, params, h0, c0):
    """Pure-JAX f32 reference mirroring the PyTorch module semantics."""
    L, _, H = params['w_ih'].shape
    xp = jax.nn.relu(jnp.einsum('btd,hd->bth', x, params['pre_w'])
                     + params['pre_b'][None, :, :])
    hn, cn = [], []
    for l in range(L):
        w_ih, w_hh = params['w_ih'][l], params['w_hh'][l]
        bias = params['b_ih'][l] + params['b_hh'][l]
        h, c = h0[l], c0[l]
        outs = []
        for t in range(xp.shape[1]):
            gates = xp[:, t, :] @ w_ih.T + h @ w_hh.T + bias
            i_g = jax.nn.sigmoid(gates[:, 0 * H:1 * H])
            f_g = jax.nn.sigmoid(gates[:, 1 * H:2 * H])
            g_g = jnp.tanh(gates[:, 2 * H:3 * H])
            o_g = jax.nn.sigmoid(gates[:, 3 * H:4 * H])
            c = f_g * c + i_g * g_g
            h = o_g * jnp.tanh(c)
            outs.append(h)
        hn.append(h)
        cn.append(c)
        xp = jnp.stack(outs, axis=1)
    out = xp[:, -1, :] @ params['fc_w'].T + params['fc_b'][0]
    return out, (jnp.stack(hn, 0), jnp.stack(cn, 0))


def init_params(key, input_dim, hidden_dim, output_dim, n_layers):
    """Deterministic synthetic parameters in PyTorch layouts (small scale)."""
    ks = jax.random.split(key, 8)
    s = 0.1
    H, L = hidden_dim, n_layers
    return {
        'pre_w': s * jax.random.normal(ks[0], (H, input_dim), jnp.float32),
        'pre_b': s * jax.random.normal(ks[1], (1, H), jnp.float32),
        # All LSTM layers have input size H (pre_fc projects to H first).
        'w_ih': s * jax.random.normal(ks[2], (L, 4 * H, H), jnp.float32),
        'w_hh': s * jax.random.normal(ks[3], (L, 4 * H, H), jnp.float32),
        'b_ih': s * jax.random.normal(ks[4], (L, 1, 4 * H), jnp.float32),
        'b_hh': s * jax.random.normal(ks[5], (L, 1, 4 * H), jnp.float32),
        'fc_w': s * jax.random.normal(ks[6], (output_dim, H), jnp.float32),
        'fc_b': s * jax.random.normal(ks[7], (1, output_dim), jnp.float32),
    }


if __name__ == "__main__":
    # B = 8 so every per-timestep (B, H) slab starts on a sublane boundary.
    B, T = 8, 8
    input_dim, hidden_dim, output_dim, n_layers = 4, 32, 3, 2

    key = jax.random.PRNGKey(0)
    k_x, k_p = jax.random.split(key)
    x = jax.random.normal(k_x, (B, T, input_dim), jnp.float32)
    params = init_params(k_p, input_dim, hidden_dim, output_dim, n_layers)

    # init_hidden: zeros of shape (n_layers, batch, hidden_dim)
    h0 = jnp.zeros((n_layers, B, hidden_dim), jnp.float32)
    c0 = jnp.zeros((n_layers, B, hidden_dim), jnp.float32)

    out, (hn, cn) = lstm_predictor_forward(x, params, h0, c0)
    jax.block_until_ready((out, hn, cn))

    ref_out, (ref_hn, ref_cn) = _reference_forward(x, params, h0, c0)
    # bf16 MXU operands (f32 accumulation / f32 cell state) -> ~1e-3-level drift.
    assert jnp.allclose(out, ref_out, atol=1e-2, rtol=1e-2)
    assert jnp.allclose(hn, ref_hn, atol=1e-2, rtol=1e-2)
    assert jnp.allclose(cn, ref_cn, atol=1e-2, rtol=1e-2)

    print("KERNEL_OK")
</pallas_src>

<mosaic_0001>
module attributes {stable_mosaic.version = 11 : i64} {
  func.func @_lstm_predictor_kernel(%arg0: memref<64x4xbf16, #tpu.memory_space<vmem>>, %arg1: memref<4x32xbf16, #tpu.memory_space<vmem>>, %arg2: memref<1x32xf32, #tpu.memory_space<vmem>>, %arg3: memref<2x32x128xbf16, #tpu.memory_space<vmem>>, %arg4: memref<2x32x128xbf16, #tpu.memory_space<vmem>>, %arg5: memref<2x1x128xf32, #tpu.memory_space<vmem>>, %arg6: memref<32x3xbf16, #tpu.memory_space<vmem>>, %arg7: memref<1x3xf32, #tpu.memory_space<vmem>>, %arg8: memref<2x8x32xf32, #tpu.memory_space<vmem>>, %arg9: memref<2x8x32xf32, #tpu.memory_space<vmem>>, %arg10: memref<8x3xf32, #tpu.memory_space<vmem>>, %arg11: memref<2x8x32xf32, #tpu.memory_space<vmem>>, %arg12: memref<2x8x32xf32, #tpu.memory_space<vmem>>, %arg13: memref<64x128xf32, #tpu.memory_space<vmem>>) attributes {dimension_semantics = [], scalar_prefetch = 0 : i64, scratch_operands = 1 : i64, tpu.core_type = #tpu.core_type<tc>} {
    %c0 = arith.constant 0 : index
    %c0_0 = arith.constant 0 : index
    %0 = vector.load %arg0[%c0, %c0_0] : memref<64x4xbf16, #tpu.memory_space<vmem>>, vector<64x4xbf16>
    %c0_1 = arith.constant 0 : index
    %c0_2 = arith.constant 0 : index
    %1 = vector.load %arg1[%c0_1, %c0_2] : memref<4x32xbf16, #tpu.memory_space<vmem>>, vector<4x32xbf16>
    %cst = arith.constant dense<0.000000e+00> : vector<64x32xf32>
    %2 = tpu.matmul %0, %1, %cst {dimension_numbers = #tpu.dot_dimension_numbers<[1], [0], [0], [1], [0, 0, 1, 1], [], []>} : vector<64x4xbf16>, vector<4x32xbf16>, vector<64x32xf32> -> vector<64x32xf32>
    %c0_3 = arith.constant 0 : index
    %c0_4 = arith.constant 0 : index
    %3 = vector.load %arg2[%c0_3, %c0_4] : memref<1x32xf32, #tpu.memory_space<vmem>>, vector<1x32xf32>
    %4 = vector.broadcast %3 : vector<1x32xf32> to vector<64x32xf32>
    %5 = arith.addf %2, %4 : vector<64x32xf32>
    %cst_5 = arith.constant 0.000000e+00 : f32
    %6 = vector.broadcast %cst_5 : f32 to vector<64x32xf32>
    %7 = arith.maximumf %5, %6 : vector<64x32xf32>
    %8 = arith.truncf %7 : vector<64x32xf32> to vector<64x32xbf16>
    %c0_6 = arith.constant 0 : index
    %c0_7 = arith.constant 0 : index
    %c0_8 = arith.constant 0 : index
    %9 = vector.load %arg3[%c0_6, %c0_7, %c0_8] : memref<2x32x128xbf16, #tpu.memory_space<vmem>>, vector<1x32x128xbf16>
    %10 = vector.shape_cast %9 : vector<1x32x128xbf16> to vector<32x128xbf16>
    %cst_9 = arith.constant dense<0.000000e+00> : vector<64x128xf32>
    %11 = tpu.matmul %8, %10, %cst_9 {dimension_numbers = #tpu.dot_dimension_numbers<[1], [0], [0], [1], [0, 0, 1, 1], [], []>} : vector<64x32xbf16>, vector<32x128xbf16>, vector<64x128xf32> -> vector<64x128xf32>
    %c0_10 = arith.constant 0 : index
    %c0_11 = arith.constant 0 : index
    %c0_12 = arith.constant 0 : index
    %12 = vector.load %arg5[%c0_10, %c0_11, %c0_12] : memref<2x1x128xf32, #tpu.memory_space<vmem>>, vector<1x1x128xf32>
    %13 = vector.shape_cast %12 : vector<1x1x128xf32> to vector<1x128xf32>
    %14 = vector.broadcast %13 : vector<1x128xf32> to vector<64x128xf32>
    %15 = arith.addf %11, %14 : vector<64x128xf32>
    %c0_13 = arith.constant 0 : index
    %c0_14 = arith.constant 0 : index
    %16 = vector.load %arg13[%c0_13, %c0_14] : memref<64x128xf32, #tpu.memory_space<vmem>>, vector<64x128xf32>
    tpu.vector_store %arg13[%c0_13, %c0_14], %15 {strides = array<i32>} : memref<64x128xf32, #tpu.memory_space<vmem>>, vector<64x128xf32>,
    %c1 = arith.constant 1 : index
    %c0_15 = arith.constant 0 : index
    %c0_16 = arith.constant 0 : index
    %17 = vector.load %arg3[%c1, %c0_15, %c0_16] : memref<2x32x128xbf16, #tpu.memory_space<vmem>>, vector<1x32x128xbf16>
    %18 = vector.shape_cast %17 : vector<1x32x128xbf16> to vector<32x128xbf16>
    %c0_17 = arith.constant 0 : index
    %c0_18 = arith.constant 0 : index
    %c0_19 = arith.constant 0 : index
    %19 = vector.load %arg4[%c0_17, %c0_18, %c0_19] : memref<2x32x128xbf16, #tpu.memory_space<vmem>>, vector<1x32x128xbf16>
    %20 = vector.shape_cast %19 : vector<1x32x128xbf16> to vector<32x128xbf16>
    %c1_20 = arith.constant 1 : index
    %c0_21 = arith.constant 0 : index
    %c0_22 = arith.constant 0 : index
    %21 = vector.load %arg4[%c1_20, %c0_21, %c0_22] : memref<2x32x128xbf16, #tpu.memory_space<vmem>>, vector<1x32x128xbf16>
    %22 = vector.shape_cast %21 : vector<1x32x128xbf16> to vector<32x128xbf16>
    %c1_23 = arith.constant 1 : index
    %c0_24 = arith.constant 0 : index
    %c0_25 = arith.constant 0 : index
    %23 = vector.load %arg5[%c1_23, %c0_24, %c0_25] : memref<2x1x128xf32, #tpu.memory_space<vmem>>, vector<1x1x128xf32>
    %24 = vector.shape_cast %23 : vector<1x1x128xf32> to vector<1x128xf32>
    %c0_26 = arith.constant 0 : index
    %c0_27 = arith.constant 0 : index
    %c0_28 = arith.constant 0 : index
    %25 = vector.load %arg8[%c0_26, %c0_27, %c0_28] : memref<2x8x32xf32, #tpu.memory_space<vmem>>, vector<1x8x32xf32>
    %26 = vector.shape_cast %25 : vector<1x8x32xf32> to vector<8x32xf32>
    %c1_29 = arith.constant 1 : index
    %c0_30 = arith.constant 0 : index
    %c0_31 = arith.constant 0 : index
    %27 = vector.load %arg8[%c1_29, %c0_30, %c0_31] : memref<2x8x32xf32, #tpu.memory_space<vmem>>, vector<1x8x32xf32>
    %28 = vector.shape_cast %27 : vector<1x8x32xf32> to vector<8x32xf32>
    %c0_32 = arith.constant 0 : index
    %c0_33 = arith.constant 0 : index
    %c0_34 = arith.constant 0 : index
    %29 = vector.load %arg9[%c0_32, %c0_33, %c0_34] : memref<2x8x32xf32, #tpu.memory_space<vmem>>, vector<1x8x32xf32>
    %30 = vector.shape_cast %29 : vector<1x8x32xf32> to vector<8x32xf32>
    %c1_35 = arith.constant 1 : index
    %c0_36 = arith.constant 0 : index
    %c0_37 = arith.constant 0 : index
    %31 = vector.load %arg9[%c1_35, %c0_36, %c0_37] : memref<2x8x32xf32, #tpu.memory_space<vmem>>, vector<1x8x32xf32>
    %32 = vector.shape_cast %31 : vector<1x8x32xf32> to vector<8x32xf32>
    %33 = arith.truncf %26 : vector<8x32xf32> to vector<8x32xbf16>
    %cst_38 = arith.constant dense<0.000000e+00> : vector<8x128xf32>
    %34 = tpu.matmul %33, %20, %cst_38 {dimension_numbers = #tpu.dot_dimension_numbers<[1], [0], [0], [1], [0, 0, 1, 1], [], []>} : vector<8x32xbf16>, vector<32x128xbf16>, vector<8x128xf32> -> vector<8x128xf32>
    %c0_39 = arith.constant 0 : index
    %c0_40 = arith.constant 0 : index
    %35 = vector.load %arg13[%c0_39, %c0_40] : memref<64x128xf32, #tpu.memory_space<vmem>>, vector<8x128xf32>
    %36 = arith.addf %35, %34 : vector<8x128xf32>
    %37 = arith.negf %36 : vector<8x128xf32>
    %38 = math.exp %37 : vector<8x128xf32>
    %cst_41 = arith.constant 1.000000e+00 : f32
    %39 = vector.broadcast %cst_41 : f32 to vector<8x128xf32>
    %40 = arith.addf %39, %38 : vector<8x128xf32>
    %41 = arith.divf %39, %40 : vector<8x128xf32>
    %42 = vector.extract_strided_slice %41 {offsets = [0, 0], sizes = [8, 32], strides = [1, 1]} : vector<8x128xf32> to vector<8x32xf32>
    %43 = vector.extract_strided_slice %41 {offsets = [0, 32], sizes = [8, 32], strides = [1, 1]} : vector<8x128xf32> to vector<8x32xf32>
    %44 = vector.extract_strided_slice %41 {offsets = [0, 64], sizes = [8, 32], strides = [1, 1]} : vector<8x128xf32> to vector<8x32xf32>
    %cst_42 = arith.constant 2.000000e+00 : f32
    %45 = vector.broadcast %cst_42 : f32 to vector<8x32xf32>
    %46 = arith.mulf %45, %44 : vector<8x32xf32>
    %cst_43 = arith.constant 1.000000e+00 : f32
    %47 = vector.broadcast %cst_43 : f32 to vector<8x32xf32>
    %48 = arith.subf %46, %47 : vector<8x32xf32>
    %49 = vector.extract_strided_slice %41 {offsets = [0, 96], sizes = [8, 32], strides = [1, 1]} : vector<8x128xf32> to vector<8x32xf32>
    %50 = arith.mulf %43, %30 : vector<8x32xf32>
    %51 = arith.mulf %42, %48 : vector<8x32xf32>
    %52 = arith.addf %50, %51 : vector<8x32xf32>
    %53 = math.tanh %52 : vector<8x32xf32>
    %54 = arith.mulf %49, %53 : vector<8x32xf32>
    %c1_i32 = arith.constant 1 : i32
    %c0_i32 = arith.constant 0 : i32
    %55 = arith.subi %c1_i32, %c0_i32 : i32
    %56 = arith.truncf %54 : vector<8x32xf32> to vector<8x32xbf16>
    %cst_44 = arith.constant dense<0.000000e+00> : vector<8x128xf32>
    %57 = tpu.matmul %56, %20, %cst_44 {dimension_numbers = #tpu.dot_dimension_numbers<[1], [0], [0], [1], [0, 0, 1, 1], [], []>} : vector<8x32xbf16>, vector<32x128xbf16>, vector<8x128xf32> -> vector<8x128xf32>
    %c8_i32 = arith.constant 8 : i32
    %58 = arith.muli %55, %c8_i32 : i32
    %59 = tpu.assume_multiple %58, 8 : i32
    %60 = arith.index_cast %59 : i32 to index
    %c0_45 = arith.constant 0 : index
    %61 = vector.load %arg13[%60, %c0_45] : memref<64x128xf32, #tpu.memory_space<vmem>>, vector<8x128xf32>
    %62 = arith.addf %61, %57 : vector<8x128xf32>
    %63 = arith.negf %62 : vector<8x128xf32>
    %64 = math.exp %63 : vector<8x128xf32>
    %cst_46 = arith.constant 1.000000e+00 : f32
    %65 = vector.broadcast %cst_46 : f32 to vector<8x128xf32>
    %66 = arith.addf %65, %64 : vector<8x128xf32>
    %67 = arith.divf %65, %66 : vector<8x128xf32>
    %68 = vector.extract_strided_slice %67 {offsets = [0, 0], sizes = [8, 32], strides = [1, 1]} : vector<8x128xf32> to vector<8x32xf32>
    %69 = vector.extract_strided_slice %67 {offsets = [0, 32], sizes = [8, 32], strides = [1, 1]} : vector<8x128xf32> to vector<8x32xf32>
    %70 = vector.extract_strided_slice %67 {offsets = [0, 64], sizes = [8, 32], strides = [1, 1]} : vector<8x128xf32> to vector<8x32xf32>
    %cst_47 = arith.constant 2.000000e+00 : f32
    %71 = vector.broadcast %cst_47 : f32 to vector<8x32xf32>
    %72 = arith.mulf %71, %70 : vector<8x32xf32>
    %cst_48 = arith.constant 1.000000e+00 : f32
    %73 = vector.broadcast %cst_48 : f32 to vector<8x32xf32>
    %74 = arith.subf %72, %73 : vector<8x32xf32>
    %75 = vector.extract_strided_slice %67 {offsets = [0, 96], sizes = [8, 32], strides = [1, 1]} : vector<8x128xf32> to vector<8x32xf32>
    %76 = arith.mulf %69, %52 : vector<8x32xf32>
    %77 = arith.mulf %68, %74 : vector<8x32xf32>
    %78 = arith.addf %76, %77 : vector<8x32xf32>
    %79 = math.tanh %78 : vector<8x32xf32>
    %80 = arith.mulf %75, %79 : vector<8x32xf32>
    %81 = arith.truncf %28 : vector<8x32xf32> to vector<8x32xbf16>
    %cst_49 = arith.constant dense<0.000000e+00> : vector<8x128xf32>
    %82 = tpu.matmul %81, %22, %cst_49 {dimension_numbers = #tpu.dot_dimension_numbers<[1], [0], [0], [1], [0, 0, 1, 1], [], []>} : vector<8x32xbf16>, vector<32x128xbf16>, vector<8x128xf32> -> vector<8x128xf32>
    %83 = arith.truncf %54 : vector<8x32xf32> to vector<8x32xbf16>
    %cst_50 = arith.constant dense<0.000000e+00> : vector<8x128xf32>
    %84 = tpu.matmul %83, %18, %cst_50 {dimension_numbers = #tpu.dot_dimension_numbers<[1], [0], [0], [1], [0, 0, 1, 1], [], []>} : vector<8x32xbf16>, vector<32x128xbf16>, vector<8x128xf32> -> vector<8x128xf32>
    %85 = arith.addf %84, %82 : vector<8x128xf32>
    %86 = vector.broadcast %24 : vector<1x128xf32> to vector<8x128xf32>
    %87 = arith.addf %85, %86 : vector<8x128xf32>
    %88 = arith.negf %87 : vector<8x128xf32>
    %89 = math.exp %88 : vector<8x128xf32>
    %cst_51 = arith.constant 1.000000e+00 : f32
    %90 = vector.broadcast %cst_51 : f32 to vector<8x128xf32>
    %91 = arith.addf %90, %89 : vector<8x128xf32>
    %92 = arith.divf %90, %91 : vector<8x128xf32>
    %93 = vector.extract_strided_slice %92 {offsets = [0, 0], sizes = [8, 32], strides = [1, 1]} : vector<8x128xf32> to vector<8x32xf32>
    %94 = vector.extract_strided_slice %92 {offsets = [0, 32], sizes = [8, 32], strides = [1, 1]} : vector<8x128xf32> to vector<8x32xf32>
    %95 = vector.extract_strided_slice %92 {offsets = [0, 64], sizes = [8, 32], strides = [1, 1]} : vector<8x128xf32> to vector<8x32xf32>
    %cst_52 = arith.constant 2.000000e+00 : f32
    %96 = vector.broadcast %cst_52 : f32 to vector<8x32xf32>
    %97 = arith.mulf %96, %95 : vector<8x32xf32>
    %cst_53 = arith.constant 1.000000e+00 : f32
    %98 = vector.broadcast %cst_53 : f32 to vector<8x32xf32>
    %99 = arith.subf %97, %98 : vector<8x32xf32>
    %100 = vector.extract_strided_slice %92 {offsets = [0, 96], sizes = [8, 32], strides = [1, 1]} : vector<8x128xf32> to vector<8x32xf32>
    %101 = arith.mulf %94, %32 : vector<8x32xf32>
    %102 = arith.mulf %93, %99 : vector<8x32xf32>
    %103 = arith.addf %101, %102 : vector<8x32xf32>
    %104 = math.tanh %103 : vector<8x32xf32>
    %105 = arith.mulf %100, %104 : vector<8x32xf32>
    %c2_i32 = arith.constant 2 : i32
    %c0_i32_54 = arith.constant 0 : i32
    %106 = arith.subi %c2_i32, %c0_i32_54 : i32
    %107 = arith.truncf %80 : vector<8x32xf32> to vector<8x32xbf16>
    %cst_55 = arith.constant dense<0.000000e+00> : vector<8x128xf32>
    %108 = tpu.matmul %107, %20, %cst_55 {dimension_numbers = #tpu.dot_dimension_numbers<[1], [0], [0], [1], [0, 0, 1, 1], [], []>} : vector<8x32xbf16>, vector<32x128xbf16>, vector<8x128xf32> -> vector<8x128xf32>
    %c8_i32_56 = arith.constant 8 : i32
    %109 = arith.muli %106, %c8_i32_56 : i32
    %110 = tpu.assume_multiple %109, 8 : i32
    %111 = arith.index_cast %110 : i32 to index
    %c0_57 = arith.constant 0 : index
    %112 = vector.load %arg13[%111, %c0_57] : memref<64x128xf32, #tpu.memory_space<vmem>>, vector<8x128xf32>
    %113 = arith.addf %112, %108 : vector<8x128xf32>
    %114 = arith.negf %113 : vector<8x128xf32>
    %115 = math.exp %114 : vector<8x128xf32>
    %cst_58 = arith.constant 1.000000e+00 : f32
    %116 = vector.broadcast %cst_58 : f32 to vector<8x128xf32>
    %117 = arith.addf %116, %115 : vector<8x128xf32>
    %118 = arith.divf %116, %117 : vector<8x128xf32>
    %119 = vector.extract_strided_slice %118 {offsets = [0, 0], sizes = [8, 32], strides = [1, 1]} : vector<8x128xf32> to vector<8x32xf32>
    %120 = vector.extract_strided_slice %118 {offsets = [0, 32], sizes = [8, 32], strides = [1, 1]} : vector<8x128xf32> to vector<8x32xf32>
    %121 = vector.extract_strided_slice %118 {offsets = [0, 64], sizes = [8, 32], strides = [1, 1]} : vector<8x128xf32> to vector<8x32xf32>
    %cst_59 = arith.constant 2.000000e+00 : f32
    %122 = vector.broadcast %cst_59 : f32 to vector<8x32xf32>
    %123 = arith.mulf %122, %121 : vector<8x32xf32>
    %cst_60 = arith.constant 1.000000e+00 : f32
    %124 = vector.broadcast %cst_60 : f32 to vector<8x32xf32>
    %125 = arith.subf %123, %124 : vector<8x32xf32>
    %126 = vector.extract_strided_slice %118 {offsets = [0, 96], sizes = [8, 32], strides = [1, 1]} : vector<8x128xf32> to vector<8x32xf32>
    %127 = arith.mulf %120, %78 : vector<8x32xf32>
    %128 = arith.mulf %119, %125 : vector<8x32xf32>
    %129 = arith.addf %127, %128 : vector<8x32xf32>
    %130 = math.tanh %129 : vector<8x32xf32>
    %131 = arith.mulf %126, %130 : vector<8x32xf32>
    %132 = arith.truncf %105 : vector<8x32xf32> to vector<8x32xbf16>
    %cst_61 = arith.constant dense<0.000000e+00> : vector<8x128xf32>
    %133 = tpu.matmul %132, %22, %cst_61 {dimension_numbers = #tpu.dot_dimension_numbers<[1], [0], [0], [1], [0, 0, 1, 1], [], []>} : vector<8x32xbf16>, vector<32x128xbf16>, vector<8x128xf32> -> vector<8x128xf32>
    %134 = arith.truncf %80 : vector<8x32xf32> to vector<8x32xbf16>
    %cst_62 = arith.constant dense<0.000000e+00> : vector<8x128xf32>
    %135 = tpu.matmul %134, %18, %cst_62 {dimension_numbers = #tpu.dot_dimension_numbers<[1], [0], [0], [1], [0, 0, 1, 1], [], []>} : vector<8x32xbf16>, vector<32x128xbf16>, vector<8x128xf32> -> vector<8x128xf32>
    %136 = arith.addf %135, %133 : vector<8x128xf32>
    %137 = vector.broadcast %24 : vector<1x128xf32> to vector<8x128xf32>
    %138 = arith.addf %136, %137 : vector<8x128xf32>
    %139 = arith.negf %138 : vector<8x128xf32>
    %140 = math.exp %139 : vector<8x128xf32>
    %cst_63 = arith.constant 1.000000e+00 : f32
    %141 = vector.broadcast %cst_63 : f32 to vector<8x128xf32>
    %142 = arith.addf %141, %140 : vector<8x128xf32>
    %143 = arith.divf %141, %142 : vector<8x128xf32>
    %144 = vector.extract_strided_slice %143 {offsets = [0, 0], sizes = [8, 32], strides = [1, 1]} : vector<8x128xf32> to vector<8x32xf32>
    %145 = vector.extract_strided_slice %143 {offsets = [0, 32], sizes = [8, 32], strides = [1, 1]} : vector<8x128xf32> to vector<8x32xf32>
    %146 = vector.extract_strided_slice %143 {offsets = [0, 64], sizes = [8, 32], strides = [1, 1]} : vector<8x128xf32> to vector<8x32xf32>
    %cst_64 = arith.constant 2.000000e+00 : f32
    %147 = vector.broadcast %cst_64 : f32 to vector<8x32xf32>
    %148 = arith.mulf %147, %146 : vector<8x32xf32>
    %cst_65 = arith.constant 1.000000e+00 : f32
    %149 = vector.broadcast %cst_65 : f32 to vector<8x32xf32>
    %150 = arith.subf %148, %149 : vector<8x32xf32>
    %151 = vector.extract_strided_slice %143 {offsets = [0, 96], sizes = [8, 32], strides = [1, 1]} : vector<8x128xf32> to vector<8x32xf32>
    %152 = arith.mulf %145, %103 : vector<8x32xf32>
    %153 = arith.mulf %144, %150 : vector<8x32xf32>
    %154 = arith.addf %152, %153 : vector<8x32xf32>
    %155 = math.tanh %154 : vector<8x32xf32>
    %156 = arith.mulf %151, %155 : vector<8x32xf32>
    %c3_i32 = arith.constant 3 : i32
    %c0_i32_66 = arith.constant 0 : i32
    %157 = arith.subi %c3_i32, %c0_i32_66 : i32
    %158 = arith.truncf %131 : vector<8x32xf32> to vector<8x32xbf16>
    %cst_67 = arith.constant dense<0.000000e+00> : vector<8x128xf32>
    %159 = tpu.matmul %158, %20, %cst_67 {dimension_numbers = #tpu.dot_dimension_numbers<[1], [0], [0], [1], [0, 0, 1, 1], [], []>} : vector<8x32xbf16>, vector<32x128xbf16>, vector<8x128xf32> -> vector<8x128xf32>
    %c8_i32_68 = arith.constant 8 : i32
    %160 = arith.muli %157, %c8_i32_68 : i32
    %161 = tpu.assume_multiple %160, 8 : i32
    %162 = arith.index_cast %161 : i32 to index
    %c0_69 = arith.constant 0 : index
    %163 = vector.load %arg13[%162, %c0_69] : memref<64x128xf32, #tpu.memory_space<vmem>>, vector<8x128xf32>
    %164 = arith.addf %163, %159 : vector<8x128xf32>
    %165 = arith.negf %164 : vector<8x128xf32>
    %166 = math.exp %165 : vector<8x128xf32>
    %cst_70 = arith.constant 1.000000e+00 : f32
    %167 = vector.broadcast %cst_70 : f32 to vector<8x128xf32>
    %168 = arith.addf %167, %166 : vector<8x128xf32>
    %169 = arith.divf %167, %168 : vector<8x128xf32>
    %170 = vector.extract_strided_slice %169 {offsets = [0, 0], sizes = [8, 32], strides = [1, 1]} : vector<8x128xf32> to vector<8x32xf32>
    %171 = vector.extract_strided_slice %169 {offsets = [0, 32], sizes = [8, 32], strides = [1, 1]} : vector<8x128xf32> to vector<8x32xf32>
    %172 = vector.extract_strided_slice %169 {offsets = [0, 64], sizes = [8, 32], strides = [1, 1]} : vector<8x128xf32> to vector<8x32xf32>
    %cst_71 = arith.constant 2.000000e+00 : f32
    %173 = vector.broadcast %cst_71 : f32 to vector<8x32xf32>
    %174 = arith.mulf %173, %172 : vector<8x32xf32>
    %cst_72 = arith.constant 1.000000e+00 : f32
    %175 = vector.broadcast %cst_72 : f32 to vector<8x32xf32>
    %176 = arith.subf %174, %175 : vector<8x32xf32>
    %177 = vector.extract_strided_slice %169 {offsets = [0, 96], sizes = [8, 32], strides = [1, 1]} : vector<8x128xf32> to vector<8x32xf32>
    %178 = arith.mulf %171, %129 : vector<8x32xf32>
    %179 = arith.mulf %170, %176 : vector<8x32xf32>
    %180 = arith.addf %178, %179 : vector<8x32xf32>
    %181 = math.tanh %180 : vector<8x32xf32>
    %182 = arith.mulf %177, %181 : vector<8x32xf32>
    %183 = arith.truncf %156 : vector<8x32xf32> to vector<8x32xbf16>
    %cst_73 = arith.constant dense<0.000000e+00> : vector<8x128xf32>
    %184 = tpu.matmul %183, %22, %cst_73 {dimension_numbers = #tpu.dot_dimension_numbers<[1], [0], [0], [1], [0, 0, 1, 1], [], []>} : vector<8x32xbf16>, vector<32x128xbf16>, vector<8x128xf32> -> vector<8x128xf32>
    %185 = arith.truncf %131 : vector<8x32xf32> to vector<8x32xbf16>
    %cst_74 = arith.constant dense<0.000000e+00> : vector<8x128xf32>
    %186 = tpu.matmul %185, %18, %cst_74 {dimension_numbers = #tpu.dot_dimension_numbers<[1], [0], [0], [1], [0, 0, 1, 1], [], []>} : vector<8x32xbf16>, vector<32x128xbf16>, vector<8x128xf32> -> vector<8x128xf32>
    %187 = arith.addf %186, %184 : vector<8x128xf32>
    %188 = vector.broadcast %24 : vector<1x128xf32> to vector<8x128xf32>
    %189 = arith.addf %187, %188 : vector<8x128xf32>
    %190 = arith.negf %189 : vector<8x128xf32>
    %191 = math.exp %190 : vector<8x128xf32>
    %cst_75 = arith.constant 1.000000e+00 : f32
    %192 = vector.broadcast %cst_75 : f32 to vector<8x128xf32>
    %193 = arith.addf %192, %191 : vector<8x128xf32>
    %194 = arith.divf %192, %193 : vector<8x128xf32>
    %195 = vector.extract_strided_slice %194 {offsets = [0, 0], sizes = [8, 32], strides = [1, 1]} : vector<8x128xf32> to vector<8x32xf32>
    %196 = vector.extract_strided_slice %194 {offsets = [0, 32], sizes = [8, 32], strides = [1, 1]} : vector<8x128xf32> to vector<8x32xf32>
    %197 = vector.extract_strided_slice %194 {offsets = [0, 64], sizes = [8, 32], strides = [1, 1]} : vector<8x128xf32> to vector<8x32xf32>
    %cst_76 = arith.constant 2.000000e+00 : f32
    %198 = vector.broadcast %cst_76 : f32 to vector<8x32xf32>
    %199 = arith.mulf %198, %197 : vector<8x32xf32>
    %cst_77 = arith.constant 1.000000e+00 : f32
    %200 = vector.broadcast %cst_77 : f32 to vector<8x32xf32>
    %201 = arith.subf %199, %200 : vector<8x32xf32>
    %202 = vector.extract_strided_slice %194 {offsets = [0, 96], sizes = [8, 32], strides = [1, 1]} : vector<8x128xf32> to vector<8x32xf32>
    %203 = arith.mulf %196, %154 : vector<8x32xf32>
    %204 = arith.mulf %195, %201 : vector<8x32xf32>
    %205 = arith.addf %203, %204 : vector<8x32xf32>
    %206 = math.tanh %205 : vector<8x32xf32>
    %207 = arith.mulf %202, %206 : vector<8x32xf32>
    %c4_i32 = arith.constant 4 : i32
    %c0_i32_78 = arith.constant 0 : i32
    %208 = arith.subi %c4_i32, %c0_i32_78 : i32
    %209 = arith.truncf %182 : vector<8x32xf32> to vector<8x32xbf16>
    %cst_79 = arith.constant dense<0.000000e+00> : vector<8x128xf32>
    %210 = tpu.matmul %209, %20, %cst_79 {dimension_numbers = #tpu.dot_dimension_numbers<[1], [0], [0], [1], [0, 0, 1, 1], [], []>} : vector<8x32xbf16>, vector<32x128xbf16>, vector<8x128xf32> -> vector<8x128xf32>
    %c8_i32_80 = arith.constant 8 : i32
    %211 = arith.muli %208, %c8_i32_80 : i32
    %212 = tpu.assume_multiple %211, 8 : i32
    %213 = arith.index_cast %212 : i32 to index
    %c0_81 = arith.constant 0 : index
    %214 = vector.load %arg13[%213, %c0_81] : memref<64x128xf32, #tpu.memory_space<vmem>>, vector<8x128xf32>
    %215 = arith.addf %214, %210 : vector<8x128xf32>
    %216 = arith.negf %215 : vector<8x128xf32>
    %217 = math.exp %216 : vector<8x128xf32>
    %cst_82 = arith.constant 1.000000e+00 : f32
    %218 = vector.broadcast %cst_82 : f32 to vector<8x128xf32>
    %219 = arith.addf %218, %217 : vector<8x128xf32>
    %220 = arith.divf %218, %219 : vector<8x128xf32>
    %221 = vector.extract_strided_slice %220 {offsets = [0, 0], sizes = [8, 32], strides = [1, 1]} : vector<8x128xf32> to vector<8x32xf32>
    %222 = vector.extract_strided_slice %220 {offsets = [0, 32], sizes = [8, 32], strides = [1, 1]} : vector<8x128xf32> to vector<8x32xf32>
    %223 = vector.extract_strided_slice %220 {offsets = [0, 64], sizes = [8, 32], strides = [1, 1]} : vector<8x128xf32> to vector<8x32xf32>
    %cst_83 = arith.constant 2.000000e+00 : f32
    %224 = vector.broadcast %cst_83 : f32 to vector<8x32xf32>
    %225 = arith.mulf %224, %223 : vector<8x32xf32>
    %cst_84 = arith.constant 1.000000e+00 : f32
    %226 = vector.broadcast %cst_84 : f32 to vector<8x32xf32>
    %227 = arith.subf %225, %226 : vector<8x32xf32>
    %228 = vector.extract_strided_slice %220 {offsets = [0, 96], sizes = [8, 32], strides = [1, 1]} : vector<8x128xf32> to vector<8x32xf32>
    %229 = arith.mulf %222, %180 : vector<8x32xf32>
    %230 = arith.mulf %221, %227 : vector<8x32xf32>
    %231 = arith.addf %229, %230 : vector<8x32xf32>
    %232 = math.tanh %231 : vector<8x32xf32>
    %233 = arith.mulf %228, %232 : vector<8x32xf32>
    %234 = arith.truncf %207 : vector<8x32xf32> to vector<8x32xbf16>
    %cst_85 = arith.constant dense<0.000000e+00> : vector<8x128xf32>
    %235 = tpu.matmul %234, %22, %cst_85 {dimension_numbers = #tpu.dot_dimension_numbers<[1], [0], [0], [1], [0, 0, 1, 1], [], []>} : vector<8x32xbf16>, vector<32x128xbf16>, vector<8x128xf32> -> vector<8x128xf32>
    %236 = arith.truncf %182 : vector<8x32xf32> to vector<8x32xbf16>
    %cst_86 = arith.constant dense<0.000000e+00> : vector<8x128xf32>
    %237 = tpu.matmul %236, %18, %cst_86 {dimension_numbers = #tpu.dot_dimension_numbers<[1], [0], [0], [1], [0, 0, 1, 1], [], []>} : vector<8x32xbf16>, vector<32x128xbf16>, vector<8x128xf32> -> vector<8x128xf32>
    %238 = arith.addf %237, %235 : vector<8x128xf32>
    %239 = vector.broadcast %24 : vector<1x128xf32> to vector<8x128xf32>
    %240 = arith.addf %238, %239 : vector<8x128xf32>
    %241 = arith.negf %240 : vector<8x128xf32>
    %242 = math.exp %241 : vector<8x128xf32>
    %cst_87 = arith.constant 1.000000e+00 : f32
    %243 = vector.broadcast %cst_87 : f32 to vector<8x128xf32>
    %244 = arith.addf %243, %242 : vector<8x128xf32>
    %245 = arith.divf %243, %244 : vector<8x128xf32>
    %246 = vector.extract_strided_slice %245 {offsets = [0, 0], sizes = [8, 32], strides = [1, 1]} : vector<8x128xf32> to vector<8x32xf32>
    %247 = vector.extract_strided_slice %245 {offsets = [0, 32], sizes = [8, 32], strides = [1, 1]} : vector<8x128xf32> to vector<8x32xf32>
    %248 = vector.extract_strided_slice %245 {offsets = [0, 64], sizes = [8, 32], strides = [1, 1]} : vector<8x128xf32> to vector<8x32xf32>
    %cst_88 = arith.constant 2.000000e+00 : f32
    %249 = vector.broadcast %cst_88 : f32 to vector<8x32xf32>
    %250 = arith.mulf %249, %248 : vector<8x32xf32>
    %cst_89 = arith.constant 1.000000e+00 : f32
    %251 = vector.broadcast %cst_89 : f32 to vector<8x32xf32>
    %252 = arith.subf %250, %251 : vector<8x32xf32>
    %253 = vector.extract_strided_slice %245 {offsets = [0, 96], sizes = [8, 32], strides = [1, 1]} : vector<8x128xf32> to vector<8x32xf32>
    %254 = arith.mulf %247, %205 : vector<8x32xf32>
    %255 = arith.mulf %246, %252 : vector<8x32xf32>
    %256 = arith.addf %254, %255 : vector<8x32xf32>
    %257 = math.tanh %256 : vector<8x32xf32>
    %258 = arith.mulf %253, %257 : vector<8x32xf32>
    %c5_i32 = arith.constant 5 : i32
    %c0_i32_90 = arith.constant 0 : i32
    %259 = arith.subi %c5_i32, %c0_i32_90 : i32
    %260 = arith.truncf %233 : vector<8x32xf32> to vector<8x32xbf16>
    %cst_91 = arith.constant dense<0.000000e+00> : vector<8x128xf32>
    %261 = tpu.matmul %260, %20, %cst_91 {dimension_numbers = #tpu.dot_dimension_numbers<[1], [0], [0], [1], [0, 0, 1, 1], [], []>} : vector<8x32xbf16>, vector<32x128xbf16>, vector<8x128xf32> -> vector<8x128xf32>
    %c8_i32_92 = arith.constant 8 : i32
    %262 = arith.muli %259, %c8_i32_92 : i32
    %263 = tpu.assume_multiple %262, 8 : i32
    %264 = arith.index_cast %263 : i32 to index
    %c0_93 = arith.constant 0 : index
    %265 = vector.load %arg13[%264, %c0_93] : memref<64x128xf32, #tpu.memory_space<vmem>>, vector<8x128xf32>
    %266 = arith.addf %265, %261 : vector<8x128xf32>
    %267 = arith.negf %266 : vector<8x128xf32>
    %268 = math.exp %267 : vector<8x128xf32>
    %cst_94 = arith.constant 1.000000e+00 : f32
    %269 = vector.broadcast %cst_94 : f32 to vector<8x128xf32>
    %270 = arith.addf %269, %268 : vector<8x128xf32>
    %271 = arith.divf %269, %270 : vector<8x128xf32>
    %272 = vector.extract_strided_slice %271 {offsets = [0, 0], sizes = [8, 32], strides = [1, 1]} : vector<8x128xf32> to vector<8x32xf32>
    %273 = vector.extract_strided_slice %271 {offsets = [0, 32], sizes = [8, 32], strides = [1, 1]} : vector<8x128xf32> to vector<8x32xf32>
    %274 = vector.extract_strided_slice %271 {offsets = [0, 64], sizes = [8, 32], strides = [1, 1]} : vector<8x128xf32> to vector<8x32xf32>
    %cst_95 = arith.constant 2.000000e+00 : f32
    %275 = vector.broadcast %cst_95 : f32 to vector<8x32xf32>
    %276 = arith.mulf %275, %274 : vector<8x32xf32>
    %cst_96 = arith.constant 1.000000e+00 : f32
    %277 = vector.broadcast %cst_96 : f32 to vector<8x32xf32>
    %278 = arith.subf %276, %277 : vector<8x32xf32>
    %279 = vector.extract_strided_slice %271 {offsets = [0, 96], sizes = [8, 32], strides = [1, 1]} : vector<8x128xf32> to vector<8x32xf32>
    %280 = arith.mulf %273, %231 : vector<8x32xf32>
    %281 = arith.mulf %272, %278 : vector<8x32xf32>
    %282 = arith.addf %280, %281 : vector<8x32xf32>
    %283 = math.tanh %282 : vector<8x32xf32>
    %284 = arith.mulf %279, %283 : vector<8x32xf32>
    %285 = arith.truncf %258 : vector<8x32xf32> to vector<8x32xbf16>
    %cst_97 = arith.constant dense<0.000000e+00> : vector<8x128xf32>
    %286 = tpu.matmul %285, %22, %cst_97 {dimension_numbers = #tpu.dot_dimension_numbers<[1], [0], [0], [1], [0, 0, 1, 1], [], []>} : vector<8x32xbf16>, vector<32x128xbf16>, vector<8x128xf32> -> vector<8x128xf32>
    %287 = arith.truncf %233 : vector<8x32xf32> to vector<8x32xbf16>
    %cst_98 = arith.constant dense<0.000000e+00> : vector<8x128xf32>
    %288 = tpu.matmul %287, %18, %cst_98 {dimension_numbers = #tpu.dot_dimension_numbers<[1], [0], [0], [1], [0, 0, 1, 1], [], []>} : vector<8x32xbf16>, vector<32x128xbf16>, vector<8x128xf32> -> vector<8x128xf32>
    %289 = arith.addf %288, %286 : vector<8x128xf32>
    %290 = vector.broadcast %24 : vector<1x128xf32> to vector<8x128xf32>
    %291 = arith.addf %289, %290 : vector<8x128xf32>
    %292 = arith.negf %291 : vector<8x128xf32>
    %293 = math.exp %292 : vector<8x128xf32>
    %cst_99 = arith.constant 1.000000e+00 : f32
    %294 = vector.broadcast %cst_99 : f32 to vector<8x128xf32>
    %295 = arith.addf %294, %293 : vector<8x128xf32>
    %296 = arith.divf %294, %295 : vector<8x128xf32>
    %297 = vector.extract_strided_slice %296 {offsets = [0, 0], sizes = [8, 32], strides = [1, 1]} : vector<8x128xf32> to vector<8x32xf32>
    %298 = vector.extract_strided_slice %296 {offsets = [0, 32], sizes = [8, 32], strides = [1, 1]} : vector<8x128xf32> to vector<8x32xf32>
    %299 = vector.extract_strided_slice %296 {offsets = [0, 64], sizes = [8, 32], strides = [1, 1]} : vector<8x128xf32> to vector<8x32xf32>
    %cst_100 = arith.constant 2.000000e+00 : f32
    %300 = vector.broadcast %cst_100 : f32 to vector<8x32xf32>
    %301 = arith.mulf %300, %299 : vector<8x32xf32>
    %cst_101 = arith.constant 1.000000e+00 : f32
    %302 = vector.broadcast %cst_101 : f32 to vector<8x32xf32>
    %303 = arith.subf %301, %302 : vector<8x32xf32>
    %304 = vector.extract_strided_slice %296 {offsets = [0, 96], sizes = [8, 32], strides = [1, 1]} : vector<8x128xf32> to vector<8x32xf32>
    %305 = arith.mulf %298, %256 : vector<8x32xf32>
    %306 = arith.mulf %297, %303 : vector<8x32xf32>
    %307 = arith.addf %305, %306 : vector<8x32xf32>
    %308 = math.tanh %307 : vector<8x32xf32>
    %309 = arith.mulf %304, %308 : vector<8x32xf32>
    %c6_i32 = arith.constant 6 : i32
    %c0_i32_102 = arith.constant 0 : i32
    %310 = arith.subi %c6_i32, %c0_i32_102 : i32
    %311 = arith.truncf %284 : vector<8x32xf32> to vector<8x32xbf16>
    %cst_103 = arith.constant dense<0.000000e+00> : vector<8x128xf32>
    %312 = tpu.matmul %311, %20, %cst_103 {dimension_numbers = #tpu.dot_dimension_numbers<[1], [0], [0], [1], [0, 0, 1, 1], [], []>} : vector<8x32xbf16>, vector<32x128xbf16>, vector<8x128xf32> -> vector<8x128xf32>
    %c8_i32_104 = arith.constant 8 : i32
    %313 = arith.muli %310, %c8_i32_104 : i32
    %314 = tpu.assume_multiple %313, 8 : i32
    %315 = arith.index_cast %314 : i32 to index
    %c0_105 = arith.constant 0 : index
    %316 = vector.load %arg13[%315, %c0_105] : memref<64x128xf32, #tpu.memory_space<vmem>>, vector<8x128xf32>
    %317 = arith.addf %316, %312 : vector<8x128xf32>
    %318 = arith.negf %317 : vector<8x128xf32>
    %319 = math.exp %318 : vector<8x128xf32>
    %cst_106 = arith.constant 1.000000e+00 : f32
    %320 = vector.broadcast %cst_106 : f32 to vector<8x128xf32>
    %321 = arith.addf %320, %319 : vector<8x128xf32>
    %322 = arith.divf %320, %321 : vector<8x128xf32>
    %323 = vector.extract_strided_slice %322 {offsets = [0, 0], sizes = [8, 32], strides = [1, 1]} : vector<8x128xf32> to vector<8x32xf32>
    %324 = vector.extract_strided_slice %322 {offsets = [0, 32], sizes = [8, 32], strides = [1, 1]} : vector<8x128xf32> to vector<8x32xf32>
    %325 = vector.extract_strided_slice %322 {offsets = [0, 64], sizes = [8, 32], strides = [1, 1]} : vector<8x128xf32> to vector<8x32xf32>
    %cst_107 = arith.constant 2.000000e+00 : f32
    %326 = vector.broadcast %cst_107 : f32 to vector<8x32xf32>
    %327 = arith.mulf %326, %325 : vector<8x32xf32>
    %cst_108 = arith.constant 1.000000e+00 : f32
    %328 = vector.broadcast %cst_108 : f32 to vector<8x32xf32>
    %329 = arith.subf %327, %328 : vector<8x32xf32>
    %330 = vector.extract_strided_slice %322 {offsets = [0, 96], sizes = [8, 32], strides = [1, 1]} : vector<8x128xf32> to vector<8x32xf32>
    %331 = arith.mulf %324, %282 : vector<8x32xf32>
    %332 = arith.mulf %323, %329 : vector<8x32xf32>
    %333 = arith.addf %331, %332 : vector<8x32xf32>
    %334 = math.tanh %333 : vector<8x32xf32>
    %335 = arith.mulf %330, %334 : vector<8x32xf32>
    %336 = arith.truncf %309 : vector<8x32xf32> to vector<8x32xbf16>
    %cst_109 = arith.constant dense<0.000000e+00> : vector<8x128xf32>
    %337 = tpu.matmul %336, %22, %cst_109 {dimension_numbers = #tpu.dot_dimension_numbers<[1], [0], [0], [1], [0, 0, 1, 1], [], []>} : vector<8x32xbf16>, vector<32x128xbf16>, vector<8x128xf32> -> vector<8x128xf32>
    %338 = arith.truncf %284 : vector<8x32xf32> to vector<8x32xbf16>
    %cst_110 = arith.constant dense<0.000000e+00> : vector<8x128xf32>
    %339 = tpu.matmul %338, %18, %cst_110 {dimension_numbers = #tpu.dot_dimension_numbers<[1], [0], [0], [1], [0, 0, 1, 1], [], []>} : vector<8x32xbf16>, vector<32x128xbf16>, vector<8x128xf32> -> vector<8x128xf32>
    %340 = arith.addf %339, %337 : vector<8x128xf32>
    %341 = vector.broadcast %24 : vector<1x128xf32> to vector<8x128xf32>
    %342 = arith.addf %340, %341 : vector<8x128xf32>
    %343 = arith.negf %342 : vector<8x128xf32>
    %344 = math.exp %343 : vector<8x128xf32>
    %cst_111 = arith.constant 1.000000e+00 : f32
    %345 = vector.broadcast %cst_111 : f32 to vector<8x128xf32>
    %346 = arith.addf %345, %344 : vector<8x128xf32>
    %347 = arith.divf %345, %346 : vector<8x128xf32>
    %348 = vector.extract_strided_slice %347 {offsets = [0, 0], sizes = [8, 32], strides = [1, 1]} : vector<8x128xf32> to vector<8x32xf32>
    %349 = vector.extract_strided_slice %347 {offsets = [0, 32], sizes = [8, 32], strides = [1, 1]} : vector<8x128xf32> to vector<8x32xf32>
    %350 = vector.extract_strided_slice %347 {offsets = [0, 64], sizes = [8, 32], strides = [1, 1]} : vector<8x128xf32> to vector<8x32xf32>
    %cst_112 = arith.constant 2.000000e+00 : f32
    %351 = vector.broadcast %cst_112 : f32 to vector<8x32xf32>
    %352 = arith.mulf %351, %350 : vector<8x32xf32>
    %cst_113 = arith.constant 1.000000e+00 : f32
    %353 = vector.broadcast %cst_113 : f32 to vector<8x32xf32>
    %354 = arith.subf %352, %353 : vector<8x32xf32>
    %355 = vector.extract_strided_slice %347 {offsets = [0, 96], sizes = [8, 32], strides = [1, 1]} : vector<8x128xf32> to vector<8x32xf32>
    %356 = arith.mulf %349, %307 : vector<8x32xf32>
    %357 = arith.mulf %348, %354 : vector<8x32xf32>
    %358 = arith.addf %356, %357 : vector<8x32xf32>
    %359 = math.tanh %358 : vector<8x32xf32>
    %360 = arith.mulf %355, %359 : vector<8x32xf32>
    %c7_i32 = arith.constant 7 : i32
    %c0_i32_114 = arith.constant 0 : i32
    %361 = arith.subi %c7_i32, %c0_i32_114 : i32
    %362 = arith.truncf %335 : vector<8x32xf32> to vector<8x32xbf16>
    %cst_115 = arith.constant dense<0.000000e+00> : vector<8x128xf32>
    %363 = tpu.matmul %362, %20, %cst_115 {dimension_numbers = #tpu.dot_dimension_numbers<[1], [0], [0], [1], [0, 0, 1, 1], [], []>} : vector<8x32xbf16>, vector<32x128xbf16>, vector<8x128xf32> -> vector<8x128xf32>
    %c8_i32_116 = arith.constant 8 : i32
    %364 = arith.muli %361, %c8_i32_116 : i32
    %365 = tpu.assume_multiple %364, 8 : i32
    %366 = arith.index_cast %365 : i32 to index
    %c0_117 = arith.constant 0 : index
    %367 = vector.load %arg13[%366, %c0_117] : memref<64x128xf32, #tpu.memory_space<vmem>>, vector<8x128xf32>
    %368 = arith.addf %367, %363 : vector<8x128xf32>
    %369 = arith.negf %368 : vector<8x128xf32>
    %370 = math.exp %369 : vector<8x128xf32>
    %cst_118 = arith.constant 1.000000e+00 : f32
    %371 = vector.broadcast %cst_118 : f32 to vector<8x128xf32>
    %372 = arith.addf %371, %370 : vector<8x128xf32>
    %373 = arith.divf %371, %372 : vector<8x128xf32>
    %374 = vector.extract_strided_slice %373 {offsets = [0, 0], sizes = [8, 32], strides = [1, 1]} : vector<8x128xf32> to vector<8x32xf32>
    %375 = vector.extract_strided_slice %373 {offsets = [0, 32], sizes = [8, 32], strides = [1, 1]} : vector<8x128xf32> to vector<8x32xf32>
    %376 = vector.extract_strided_slice %373 {offsets = [0, 64], sizes = [8, 32], strides = [1, 1]} : vector<8x128xf32> to vector<8x32xf32>
    %cst_119 = arith.constant 2.000000e+00 : f32
    %377 = vector.broadcast %cst_119 : f32 to vector<8x32xf32>
    %378 = arith.mulf %377, %376 : vector<8x32xf32>
    %cst_120 = arith.constant 1.000000e+00 : f32
    %379 = vector.broadcast %cst_120 : f32 to vector<8x32xf32>
    %380 = arith.subf %378, %379 : vector<8x32xf32>
    %381 = vector.extract_strided_slice %373 {offsets = [0, 96], sizes = [8, 32], strides = [1, 1]} : vector<8x128xf32> to vector<8x32xf32>
    %382 = arith.mulf %375, %333 : vector<8x32xf32>
    %383 = arith.mulf %374, %380 : vector<8x32xf32>
    %384 = arith.addf %382, %383 : vector<8x32xf32>
    %385 = math.tanh %384 : vector<8x32xf32>
    %386 = arith.mulf %381, %385 : vector<8x32xf32>
    %387 = arith.truncf %360 : vector<8x32xf32> to vector<8x32xbf16>
    %cst_121 = arith.constant dense<0.000000e+00> : vector<8x128xf32>
    %388 = tpu.matmul %387, %22, %cst_121 {dimension_numbers = #tpu.dot_dimension_numbers<[1], [0], [0], [1], [0, 0, 1, 1], [], []>} : vector<8x32xbf16>, vector<32x128xbf16>, vector<8x128xf32> -> vector<8x128xf32>
    %389 = arith.truncf %335 : vector<8x32xf32> to vector<8x32xbf16>
    %cst_122 = arith.constant dense<0.000000e+00> : vector<8x128xf32>
    %390 = tpu.matmul %389, %18, %cst_122 {dimension_numbers = #tpu.dot_dimension_numbers<[1], [0], [0], [1], [0, 0, 1, 1], [], []>} : vector<8x32xbf16>, vector<32x128xbf16>, vector<8x128xf32> -> vector<8x128xf32>
    %391 = arith.addf %390, %388 : vector<8x128xf32>
    %392 = vector.broadcast %24 : vector<1x128xf32> to vector<8x128xf32>
    %393 = arith.addf %391, %392 : vector<8x128xf32>
    %394 = arith.negf %393 : vector<8x128xf32>
    %395 = math.exp %394 : vector<8x128xf32>
    %cst_123 = arith.constant 1.000000e+00 : f32
    %396 = vector.broadcast %cst_123 : f32 to vector<8x128xf32>
    %397 = arith.addf %396, %395 : vector<8x128xf32>
    %398 = arith.divf %396, %397 : vector<8x128xf32>
    %399 = vector.extract_strided_slice %398 {offsets = [0, 0], sizes = [8, 32], strides = [1, 1]} : vector<8x128xf32> to vector<8x32xf32>
    %400 = vector.extract_strided_slice %398 {offsets = [0, 32], sizes = [8, 32], strides = [1, 1]} : vector<8x128xf32> to vector<8x32xf32>
    %401 = vector.extract_strided_slice %398 {offsets = [0, 64], sizes = [8, 32], strides = [1, 1]} : vector<8x128xf32> to vector<8x32xf32>
    %cst_124 = arith.constant 2.000000e+00 : f32
    %402 = vector.broadcast %cst_124 : f32 to vector<8x32xf32>
    %403 = arith.mulf %402, %401 : vector<8x32xf32>
    %cst_125 = arith.constant 1.000000e+00 : f32
    %404 = vector.broadcast %cst_125 : f32 to vector<8x32xf32>
    %405 = arith.subf %403, %404 : vector<8x32xf32>
    %406 = vector.extract_strided_slice %398 {offsets = [0, 96], sizes = [8, 32], strides = [1, 1]} : vector<8x128xf32> to vector<8x32xf32>
    %407 = arith.mulf %400, %358 : vector<8x32xf32>
    %408 = arith.mulf %399, %405 : vector<8x32xf32>
    %409 = arith.addf %407, %408 : vector<8x32xf32>
    %410 = math.tanh %409 : vector<8x32xf32>
    %411 = arith.mulf %406, %410 : vector<8x32xf32>
    %c7_i32_126 = arith.constant 7 : i32
    %412 = arith.truncf %411 : vector<8x32xf32> to vector<8x32xbf16>
    %cst_127 = arith.constant dense<0.000000e+00> : vector<8x128xf32>
    %413 = tpu.matmul %412, %22, %cst_127 {dimension_numbers = #tpu.dot_dimension_numbers<[1], [0], [0], [1], [0, 0, 1, 1], [], []>} : vector<8x32xbf16>, vector<32x128xbf16>, vector<8x128xf32> -> vector<8x128xf32>
    %414 = arith.truncf %386 : vector<8x32xf32> to vector<8x32xbf16>
    %cst_128 = arith.constant dense<0.000000e+00> : vector<8x128xf32>
    %415 = tpu.matmul %414, %18, %cst_128 {dimension_numbers = #tpu.dot_dimension_numbers<[1], [0], [0], [1], [0, 0, 1, 1], [], []>} : vector<8x32xbf16>, vector<32x128xbf16>, vector<8x128xf32> -> vector<8x128xf32>
    %416 = arith.addf %415, %413 : vector<8x128xf32>
    %417 = vector.broadcast %24 : vector<1x128xf32> to vector<8x128xf32>
    %418 = arith.addf %416, %417 : vector<8x128xf32>
    %419 = arith.negf %418 : vector<8x128xf32>
    %420 = math.exp %419 : vector<8x128xf32>
    %cst_129 = arith.constant 1.000000e+00 : f32
    %421 = vector.broadcast %cst_129 : f32 to vector<8x128xf32>
    %422 = arith.addf %421, %420 : vector<8x128xf32>
    %423 = arith.divf %421, %422 : vector<8x128xf32>
    %424 = vector.extract_strided_slice %423 {offsets = [0, 0], sizes = [8, 32], strides = [1, 1]} : vector<8x128xf32> to vector<8x32xf32>
    %425 = vector.extract_strided_slice %423 {offsets = [0, 32], sizes = [8, 32], strides = [1, 1]} : vector<8x128xf32> to vector<8x32xf32>
    %426 = vector.extract_strided_slice %423 {offsets = [0, 64], sizes = [8, 32], strides = [1, 1]} : vector<8x128xf32> to vector<8x32xf32>
    %cst_130 = arith.constant 2.000000e+00 : f32
    %427 = vector.broadcast %cst_130 : f32 to vector<8x32xf32>
    %428 = arith.mulf %427, %426 : vector<8x32xf32>
    %cst_131 = arith.constant 1.000000e+00 : f32
    %429 = vector.broadcast %cst_131 : f32 to vector<8x32xf32>
    %430 = arith.subf %428, %429 : vector<8x32xf32>
    %431 = vector.extract_strided_slice %423 {offsets = [0, 96], sizes = [8, 32], strides = [1, 1]} : vector<8x128xf32> to vector<8x32xf32>
    %432 = arith.mulf %425, %409 : vector<8x32xf32>
    %433 = arith.mulf %424, %430 : vector<8x32xf32>
    %434 = arith.addf %432, %433 : vector<8x32xf32>
    %435 = math.tanh %434 : vector<8x32xf32>
    %436 = arith.mulf %431, %435 : vector<8x32xf32>
    %c0_132 = arith.constant 0 : index
    %c0_133 = arith.constant 0 : index
    %c0_134 = arith.constant 0 : index
    %437 = vector.load %arg11[%c0_132, %c0_133, %c0_134] : memref<2x8x32xf32, #tpu.memory_space<vmem>>, vector<1x8x32xf32>
    %438 = vector.shape_cast %437 : vector<1x8x32xf32> to vector<8x32xf32>
    %439 = vector.shape_cast %386 : vector<8x32xf32> to vector<1x8x32xf32>
    tpu.vector_store %arg11[%c0_132, %c0_133, %c0_134], %439 {strides = array<i32>} : memref<2x8x32xf32, #tpu.memory_space<vmem>>, vector<1x8x32xf32>,
    %c0_135 = arith.constant 0 : index
    %c0_136 = arith.constant 0 : index
    %c0_137 = arith.constant 0 : index
    %440 = vector.load %arg12[%c0_135, %c0_136, %c0_137] : memref<2x8x32xf32, #tpu.memory_space<vmem>>, vector<1x8x32xf32>
    %441 = vector.shape_cast %440 : vector<1x8x32xf32> to vector<8x32xf32>
    %442 = vector.shape_cast %384 : vector<8x32xf32> to vector<1x8x32xf32>
    tpu.vector_store %arg12[%c0_135, %c0_136, %c0_137], %442 {strides = array<i32>} : memref<2x8x32xf32, #tpu.memory_space<vmem>>, vector<1x8x32xf32>,
    %c1_138 = arith.constant 1 : index
    %c0_139 = arith.constant 0 : index
    %c0_140 = arith.constant 0 : index
    %443 = vector.load %arg11[%c1_138, %c0_139, %c0_140] : memref<2x8x32xf32, #tpu.memory_space<vmem>>, vector<1x8x32xf32>
    %444 = vector.shape_cast %443 : vector<1x8x32xf32> to vector<8x32xf32>
    %445 = vector.shape_cast %436 : vector<8x32xf32> to vector<1x8x32xf32>
    tpu.vector_store %arg11[%c1_138, %c0_139, %c0_140], %445 {strides = array<i32>} : memref<2x8x32xf32, #tpu.memory_space<vmem>>, vector<1x8x32xf32>,
    %c1_141 = arith.constant 1 : index
    %c0_142 = arith.constant 0 : index
    %c0_143 = arith.constant 0 : index
    %446 = vector.load %arg12[%c1_141, %c0_142, %c0_143] : memref<2x8x32xf32, #tpu.memory_space<vmem>>, vector<1x8x32xf32>
    %447 = vector.shape_cast %446 : vector<1x8x32xf32> to vector<8x32xf32>
    %448 = vector.shape_cast %434 : vector<8x32xf32> to vector<1x8x32xf32>
    tpu.vector_store %arg12[%c1_141, %c0_142, %c0_143], %448 {strides = array<i32>} : memref<2x8x32xf32, #tpu.memory_space<vmem>>, vector<1x8x32xf32>,
    %449 = arith.truncf %436 : vector<8x32xf32> to vector<8x32xbf16>
    %c0_144 = arith.constant 0 : index
    %c0_145 = arith.constant 0 : index
    %450 = vector.load %arg6[%c0_144, %c0_145] : memref<32x3xbf16, #tpu.memory_space<vmem>>, vector<32x3xbf16>
    %cst_146 = arith.constant dense<0.000000e+00> : vector<8x3xf32>
    %451 = tpu.matmul %449, %450, %cst_146 {dimension_numbers = #tpu.dot_dimension_numbers<[1], [0], [0], [1], [0, 0, 1, 1], [], []>} : vector<8x32xbf16>, vector<32x3xbf16>, vector<8x3xf32> -> vector<8x3xf32>
    %c0_147 = arith.constant 0 : index
    %c0_148 = arith.constant 0 : index
    %452 = vector.load %arg7[%c0_147, %c0_148] : memref<1x3xf32, #tpu.memory_space<vmem>>, vector<1x3xf32>
    %453 = vector.broadcast %452 : vector<1x3xf32> to vector<8x3xf32>
    %454 = arith.addf %451, %453 : vector<8x3xf32>
    %c0_149 = arith.constant 0 : index
    %c0_150 = arith.constant 0 : index
    %455 = vector.load %arg10[%c0_149, %c0_150] : memref<8x3xf32, #tpu.memory_space<vmem>>, vector<8x3xf32>
    tpu.vector_store %arg10[%c0_149, %c0_150], %454 {strides = array<i32>} : memref<8x3xf32, #tpu.memory_space<vmem>>, vector<8x3xf32>,
    return
  }
}

</mosaic_0001>

<llo_original>
// kernel: tpu_custom_call.1
$region0: #{tpu_custom_call.1}
  #allocation0 [shape = 'u32[]', space=smem, size = 0x4, offset = 0x4, fixed_abs, tag = 'smem constant byte address 0x4 - core index']
  #allocation1 [shape = 'u32[144,128]{1,0:T(1,128)}', space=vmem, size = 0x12000, scoped, tag = 'internal scratch']
  #allocation2 [shape = 'f32[64,128]{1,0:T(8,128)}', space=vmem, size = 0x8000, scoped, tag = 'scratch operand']
  %s0 = inlined_call_operand.vmem [shape: bf16[64,4], index: 0, kind: input, shape index: {}]
  %s1 = inlined_call_operand.vmem [shape: bf16[4,32], index: 1, kind: input, shape index: {}]
  %s2 = inlined_call_operand.hbm [shape: f32[1,32], index: 2, kind: input, shape index: {}]
  %s3 = inlined_call_operand.vmem [shape: bf16[2,32,128], index: 3, kind: input, shape index: {}]
  %s4 = inlined_call_operand.vmem [shape: bf16[2,32,128], index: 4, kind: input, shape index: {}]
  %s5 = inlined_call_operand.hbm [shape: f32[2,1,128], index: 5, kind: input, shape index: {}]
  %s6 = inlined_call_operand.vmem [shape: bf16[32,3], index: 6, kind: input, shape index: {}]
  %s7 = inlined_call_operand.hbm [shape: f32[1,3], index: 7, kind: input, shape index: {}]
  %s8 = inlined_call_operand.vmem [shape: f32[2,8,32], index: 8, kind: input, shape index: {}]
  %s9 = inlined_call_operand.hbm [shape: f32[2,8,32], index: 9, kind: input, shape index: {}]
  %s10 = inlined_call_operand.vmem [shape: f32[8,3], index: 10, kind: output, shape index: {0}]
  %s11 = inlined_call_operand.hbm [shape: f32[2,8,32], index: 11, kind: output, shape index: {1}]
  %s12 = inlined_call_operand.hbm [shape: f32[2,8,32], index: 12, kind: output, shape index: {2}]
  %13 = xla_tuple %s10, %s11, %s12
  %s14 = sld [smem:[#allocation0]]
  $region82: #{tpu_custom_call.1} parent=0
    _
  %s16 = ssub.s32 1, %s14
  %s17 = scalar_select 0, %s16, %s14
  $region1: #{tpu_custom_call.1} parent=0
    #allocation3 [shape = 'u8[512]{0}', space=vmem, size = 0x400, scoped, tag = 'input window, operand 2, single buffered']
    #allocation4 [shape = 's32[1]{0}', space=sflag, size = 0x4, scoped, tag = 'scoped memory for tpu_custom_call.1']
    #allocation5 [shape = 's32[1]{0}', space=sflag, size = 0x4, scoped, tag = 'scoped memory for tpu_custom_call.1']
    #allocation6 [shape = 'u8[1024]{0}', space=vmem, size = 0x400, scoped, tag = 'input window, operand 5, single buffered']
    #allocation7 [shape = 's32[1]{0}', space=sflag, size = 0x4, scoped, tag = 'scoped memory for tpu_custom_call.1']
    #allocation8 [shape = 'u8[512]{0}', space=vmem, size = 0x400, scoped, tag = 'input window, operand 7, single buffered']
    #allocation9 [shape = 'u8[8192]{0}', space=vmem, size = 0x2000, scoped, tag = 'input window, operand 9, single buffered']
    #allocation10 [shape = 's32[1]{0}', space=sflag, size = 0x4, scoped, tag = 'scoped memory for tpu_custom_call.1']
    #allocation11 [shape = 'u8[8192]{0}', space=vmem, size = 0x2000, scoped, tag = 'output window, operand 1, single buffered']
    #allocation12 [shape = 'u8[8192]{0}', space=vmem, size = 0x2000, scoped, tag = 'output window, operand 2, single buffered']
    #allocation13 [shape = 's32[1]{0}', space=sflag, size = 0x4, scoped, tag = 'scoped memory for tpu_custom_call.1']
    %18 = vsyncpa [#allocation4], 0
    %19 = vsyncpa [#allocation7], 0
    %20 = vsyncpa [#allocation10], 0
    %21 = vsyncpa [#allocation5], 0
    %22 = vsyncpa [#allocation13], 0
    // Predicated region
    $region2: #{tpu_custom_call.1} parent=1 // pred_check
      _
    $region3: #{tpu_custom_call.1} parent=1 // pred_check_branch
      %24 = sbr.rel (0) target = $region5
    $region4: #{tpu_custom_call.1} parent=1 // pred_region
      _
    $region5: #{tpu_custom_call.1} parent=1 // pred_fallthru
      _
    // Predicated region
    $region6: #{tpu_custom_call.1} parent=1 // pred_check
      _
    $region7: #{tpu_custom_call.1} parent=1 // pred_check_branch
      %26 = sbr.rel (0) target = $region9
    $region8: #{tpu_custom_call.1} parent=1 // pred_region
      _
    $region9: #{tpu_custom_call.1} parent=1 // pred_fallthru
      _
    // Predicated region
    $region10: #{tpu_custom_call.1} parent=1 // pred_check
      _
    $region11: #{tpu_custom_call.1} parent=1 // pred_check_branch
      %28 = sbr.rel (0) target = $region13
    $region12: #{tpu_custom_call.1} parent=1 // pred_region
      %s30 = ssub.s32 16, 16
      %31 = vsyncadd [#allocation4], %s30
      %s33 = sshll.u32 [#allocation3], 4
      %s34 = int_to_ptr.vmem [resolvable:$true] %s33
      %36 = dma.hbm_to_vmem [thread:$0]  %s2, 16, %s34, [#allocation4]
    $region13: #{tpu_custom_call.1} parent=1 // pred_fallthru
      _
    // Predicated region
    $region14: #{tpu_custom_call.1} parent=1 // pred_check
      _
    $region15: #{tpu_custom_call.1} parent=1 // pred_check_branch
      %38 = sbr.rel (0) target = $region17
    $region16: #{tpu_custom_call.1} parent=1 // pred_region
      _
    $region17: #{tpu_custom_call.1} parent=1 // pred_fallthru
      _
    // Predicated region
    $region18: #{tpu_custom_call.1} parent=1 // pred_check
      _
    $region19: #{tpu_custom_call.1} parent=1 // pred_check_branch
      %40 = sbr.rel (0) target = $region21
    $region20: #{tpu_custom_call.1} parent=1 // pred_region
      _
    $region21: #{tpu_custom_call.1} parent=1 // pred_fallthru
      _
    // Predicated region
    $region22: #{tpu_custom_call.1} parent=1 // pred_check
      _
    $region23: #{tpu_custom_call.1} parent=1 // pred_check_branch
      %42 = sbr.rel (0) target = $region25
    $region24: #{tpu_custom_call.1} parent=1 // pred_region
      %s44 = ssub.s32 32, 32
      %45 = vsyncadd [#allocation7], %s44
      %s46 = sshll.u32 [#allocation6], 4
      %s47 = int_to_ptr.vmem [resolvable:$true] %s46
      %52 = dma.hbm_to_vmem [thread:$0]  %s5, 32, %s47, [#allocation7], 16, 16, 1
    $region25: #{tpu_custom_call.1} parent=1 // pred_fallthru
      _
    // Predicated region
    $region26: #{tpu_custom_call.1} parent=1 // pred_check
      _
    $region27: #{tpu_custom_call.1} parent=1 // pred_check_branch
      %54 = sbr.rel (0) target = $region29
    $region28: #{tpu_custom_call.1} parent=1 // pred_region
      _
    $region29: #{tpu_custom_call.1} parent=1 // pred_fallthru
      _
    // Predicated region
    $region30: #{tpu_custom_call.1} parent=1 // pred_check
      _
    $region31: #{tpu_custom_call.1} parent=1 // pred_check_branch
      %56 = sbr.rel (0) target = $region33
    $region32: #{tpu_custom_call.1} parent=1 // pred_region
      %s58 = ssub.s32 16, 16
      %59 = vsyncadd [#allocation7], %s58
      %s61 = sshll.u32 [#allocation8], 4
      %s62 = int_to_ptr.vmem [resolvable:$true] %s61
      %64 = dma.hbm_to_vmem [thread:$0]  %s7, 16, %s62, [#allocation7]
    $region33: #{tpu_custom_call.1} parent=1 // pred_fallthru
      _
    // Predicated region
    $region34: #{tpu_custom_call.1} parent=1 // pred_check
      _
    $region35: #{tpu_custom_call.1} parent=1 // pred_check_branch
      %66 = sbr.rel (0) target = $region37
    $region36: #{tpu_custom_call.1} parent=1 // pred_region
      _
    $region37: #{tpu_custom_call.1} parent=1 // pred_fallthru
      _
    // Predicated region
    $region38: #{tpu_custom_call.1} parent=1 // pred_check
      _
    $region39: #{tpu_custom_call.1} parent=1 // pred_check_branch
      %68 = sbr.rel (0) target = $region41
    $region40: #{tpu_custom_call.1} parent=1 // pred_region
      %s70 = ssub.s32 256, 256
      %71 = vsyncadd [#allocation10], %s70
      %s72 = sshll.u32 [#allocation9], 4
      %s73 = int_to_ptr.vmem [resolvable:$true] %s72
      %78 = dma.hbm_to_vmem [thread:$0]  %s9, 256, %s73, [#allocation10], 128, 128, 8
    $region41: #{tpu_custom_call.1} parent=1 // pred_fallthru
      _
    // Predicated region
    $region42: #{tpu_custom_call.1} parent=1 // pred_check
      _
    $region43: #{tpu_custom_call.1} parent=1 // pred_check_branch
      %80 = sbr.rel (0) target = $region45
    $region44: #{tpu_custom_call.1} parent=1 // pred_region
      %81 = dma.done [#allocation4], 16
    $region45: #{tpu_custom_call.1} parent=1 // pred_fallthru
      _
    // Predicated region
    $region46: #{tpu_custom_call.1} parent=1 // pred_check
      _
    $region47: #{tpu_custom_call.1} parent=1 // pred_check_branch
      %83 = sbr.rel (0) target = $region49
    $region48: #{tpu_custom_call.1} parent=1 // pred_region
      %84 = dma.done [#allocation7], 32
    $region49: #{tpu_custom_call.1} parent=1 // pred_fallthru
      _
    // Predicated region
    $region50: #{tpu_custom_call.1} parent=1 // pred_check
      _
    $region51: #{tpu_custom_call.1} parent=1 // pred_check_branch
      %86 = sbr.rel (0) target = $region53
    $region52: #{tpu_custom_call.1} parent=1 // pred_region
      %87 = dma.done [#allocation7], 16
    $region53: #{tpu_custom_call.1} parent=1 // pred_fallthru
      _
    // Predicated region
    $region54: #{tpu_custom_call.1} parent=1 // pred_check
      _
    $region55: #{tpu_custom_call.1} parent=1 // pred_check_branch
      %89 = sbr.rel (0) target = $region57
    $region56: #{tpu_custom_call.1} parent=1 // pred_region
      %90 = dma.done [#allocation10], 256
    $region57: #{tpu_custom_call.1} parent=1 // pred_fallthru
      _
    %v92 = vld [vmem:[%s0] sm:$0xf]
    %v93 = vld [vmem:[%s0 + $0x4] sm:$0xf]
    %v94 = vld [vmem:[%s0 + $0x8] sm:$0xf]
    %v95 = vld [vmem:[%s0 + $0xc] sm:$0xf]
    %v96 = vld [vmem:[%s0 + $0x10] sm:$0xf]
    %v97 = vld [vmem:[%s0 + $0x14] sm:$0xf]
    %v98 = vld [vmem:[%s0 + $0x18] sm:$0xf]
    %v99 = vld [vmem:[%s0 + $0x1c] sm:$0xf]
    %v100 = vld [vmem:[%s1] sm:$0x3]
    %v101 = vld [vmem:[#allocation3] sm:$0x1]
    %v103 = vlaneseq
    %v104 = vshrl.u32 %v103, 7
    %v105 = vsub.s32 0, %v104
    %v106 = vrot.slane %v101, %v105
    %v116 = vunpack.c.l.b16 %v92
    %v117 = vunpack.c.l.b16 %v93
    %v118 = vunpack.c.l.b16 %v94
    %v119 = vunpack.c.l.b16 %v95
    %v120 = vunpack.c.l.b16 %v96
    %v121 = vunpack.c.l.b16 %v97
    %v122 = vunpack.c.l.b16 %v98
    %v123 = vunpack.c.l.b16 %v99
    %v124 = vpack.c.b16 %v117, %v116
    %v125 = vpack.c.b16 %v119, %v118
    %v126 = vpack.c.b16 %v121, %v120
    %v127 = vpack.c.b16 %v123, %v122
    %vm128 = vcmask 31744
    %v130 = vsel %vm128, %v124, 0
    %v133 = vsel %vm128, %v125, 0
    %v136 = vsel %vm128, %v126, 0
    %v139 = vsel %vm128, %v127, 0
    %vm141 = vcmask 1041408
    %v143 = vsel %vm141, %v100, 0
    %145 = vmatprep.subr.bf16.mxu0 0
    %146 = vmatpush1.bf16.msra.mxu0 %v143
    %147 = vmatprep.subr.bf16.mxu0 0
    %148 = vmatpush1.bf16.msra.mxu0 0
    %149 = vmatprep.subr.bf16.mxu0 0
    %150 = vmatpush1.bf16.msra.mxu0 0
    %151 = vmatprep.subr.bf16.mxu0 0
    %152 = vmatpush1.bf16.msra.mxu0 0
    %153 = vmatprep.subr.bf16.mxu0 0
    %154 = vmatpush1.bf16.msra.mxu0 0
    %155 = vmatprep.subr.bf16.mxu0 0
    %156 = vmatpush1.bf16.msra.mxu0 0
    %157 = vmatprep.subr.bf16.mxu0 0
    %158 = vmatpush1.bf16.msra.mxu0 0
    %159 = vmatprep.subr.bf16.mxu0 0
    %160 = vmatpush1.bf16.msra.mxu0 0
    %161 = vmatprep.subr.bf16.mxu0 0
    %162 = vmatpush1.bf16.msra.mxu0 0
    %163 = vmatprep.subr.bf16.mxu0 0
    %164 = vmatpush1.bf16.msra.mxu0 0
    %165 = vmatprep.subr.bf16.mxu0 0
    %166 = vmatpush1.bf16.msra.mxu0 0
    %167 = vmatprep.subr.bf16.mxu0 0
    %168 = vmatpush1.bf16.msra.mxu0 0
    %169 = vmatprep.subr.bf16.mxu0 0
    %170 = vmatpush1.bf16.msra.mxu0 0
    %171 = vmatprep.subr.bf16.mxu0 0
    %172 = vmatpush1.bf16.msra.mxu0 0
    %173 = vmatprep.subr.bf16.mxu0 0
    %174 = vmatpush1.bf16.msra.mxu0 0
    %175 = vmatprep.subr.bf16.mxu0 0
    %176 = vmatpush1.bf16.msra.mxu0 0
    %177 = vmatprep.mubr.bf16.mxu0 0
    %178 = vmatmul.mubr.bf16.gmra.mrb[0].mxu0 %v130
    %v179 = vpop.f32.mrb[0].mxu0
    %v180 = vadd.f32 %v106, %v179
    %v181 = vpop.f32.mrb[0].mxu0
    %v182 = vpop.f32.mrb[0].mxu0
    %v183 = vadd.f32 %v106, %v182
    %v184 = vpop.f32.mrb[0].mxu0
    %185 = vmatprep.mubr.bf16.mxu0 0
    %186 = vmatmul.mubr.bf16.gmra.mrb[0].mxu0 %v133
    %v187 = vpop.f32.mrb[0].mxu0
    %v188 = vadd.f32 %v106, %v187
    %v189 = vpop.f32.mrb[0].mxu0
    %v190 = vpop.f32.mrb[0].mxu0
    %v191 = vadd.f32 %v106, %v190
    %v192 = vpop.f32.mrb[0].mxu0
    %193 = vmatprep.mubr.bf16.mxu0 0
    %194 = vmatmul.mubr.bf16.gmra.mrb[0].mxu0 %v136
    %v195 = vpop.f32.mrb[0].mxu0
    %v196 = vadd.f32 %v106, %v195
    %v197 = vpop.f32.mrb[0].mxu0
    %v198 = vpop.f32.mrb[0].mxu0
    %v199 = vadd.f32 %v106, %v198
    %v200 = vpop.f32.mrb[0].mxu0
    %201 = vmatprep.mubr.bf16.mxu0 0
    %202 = vmatmul.mubr.bf16.gmra.mrb[0].mxu0 %v139
    %v203 = vpop.f32.mrb[0].mxu0
    %v204 = vadd.f32 %v106, %v203
    %v205 = vpop.f32.mrb[0].mxu0
    %v206 = vpop.f32.mrb[0].mxu0
    %v207 = vadd.f32 %v106, %v206
    %v208 = vpop.f32.mrb[0].mxu0
    %209 = vdwg.mxu0
    %v210 = vmax.f32 %v180, 0.0
    %v211 = vmax.f32 %v183, 0.0
    %v212 = vmax.f32 %v188, 0.0
    %v213 = vmax.f32 %v191, 0.0
    %v214 = vmax.f32 %v196, 0.0
    %v215 = vmax.f32 %v199, 0.0
    %v216 = vmax.f32 %v204, 0.0
    %v217 = vmax.f32 %v207, 0.0
    %v218 = vpack.c.bf16 %v211, %v210
    %v219 = vpack.c.bf16 %v213, %v212
    %v220 = vpack.c.bf16 %v215, %v214
    %v221 = vpack.c.bf16 %v217, %v216
    %v222 = vld [vmem:[%s3] sm:$0xf]
    %v223 = vld [vmem:[%s3 + $0x4] sm:$0xf]
    %v224 = vld [vmem:[%s3 + $0x8] sm:$0xf]
    %v225 = vld [vmem:[%s3 + $0xc] sm:$0xf]
    %v226 = vld [vmem:[#allocation6] sm:$0x1]
    %v228 = vlaneseq
    %v229 = vshrl.u32 %v228, 7
    %v230 = vsub.s32 0, %v229
    %v231 = vrot.slane %v226, %v230
    %v237 = vunpack.c.l.b16 %v222
    %v238 = vunpack.c.l.b16 %v223
    %v239 = vunpack.c.l.b16 %v224
    %v240 = vunpack.c.l.b16 %v225
    %v241 = vpack.c.b16 %v238, %v237
    %v242 = vpack.c.b16 %v240, %v239
    %vm245 = vcmask 261120
    %v247 = vsel %vm245, %v218, 0
    %v250 = vsel %vm245, %v219, 0
    %v253 = vsel %vm245, %v220, 0
    %v256 = vsel %vm245, %v221, 0
    %258 = vmatprep.subr.bf16.mxu0 0
    %259 = vmatpush1.bf16.msra.mxu0 %v241
    %260 = vmatprep.subr.bf16.mxu0 0
    %261 = vmatpush1.bf16.msra.mxu0 %v242
    %262 = vmatprep.subr.bf16.mxu0 0
    %263 = vmatpush1.bf16.msra.mxu0 0
    %264 = vmatprep.subr.bf16.mxu0 0
    %265 = vmatpush1.bf16.msra.mxu0 0
    %266 = vmatprep.subr.bf16.mxu0 0
    %267 = vmatpush1.bf16.msra.mxu0 0
    %268 = vmatprep.subr.bf16.mxu0 0
    %269 = vmatpush1.bf16.msra.mxu0 0
    %270 = vmatprep.subr.bf16.mxu0 0
    %271 = vmatpush1.bf16.msra.mxu0 0
    %272 = vmatprep.subr.bf16.mxu0 0
    %273 = vmatpush1.bf16.msra.mxu0 0
    %274 = vmatprep.subr.bf16.mxu0 0
    %275 = vmatpush1.bf16.msra.mxu0 0
    %276 = vmatprep.subr.bf16.mxu0 0
    %277 = vmatpush1.bf16.msra.mxu0 0
    %278 = vmatprep.subr.bf16.mxu0 0
    %279 = vmatpush1.bf16.msra.mxu0 0
    %280 = vmatprep.subr.bf16.mxu0 0
    %281 = vmatpush1.bf16.msra.mxu0 0
    %282 = vmatprep.subr.bf16.mxu0 0
    %283 = vmatpush1.bf16.msra.mxu0 0
    %284 = vmatprep.subr.bf16.mxu0 0
    %285 = vmatpush1.bf16.msra.mxu0 0
    %286 = vmatprep.subr.bf16.mxu0 0
    %287 = vmatpush1.bf16.msra.mxu0 0
    %288 = vmatprep.subr.bf16.mxu0 0
    %289 = vmatpush1.bf16.msra.mxu0 0
    %290 = vmatprep.mubr.bf16.mxu0 0
    %291 = vmatmul.mubr.bf16.gmra.mrb[0].mxu0 %v247
    %v292 = vpop.f32.mrb[0].mxu0
    %v293 = vadd.f32 %v231, %v292
    %v294 = vpop.f32.mrb[0].mxu0
    %v295 = vpop.f32.mrb[0].mxu0
    %v296 = vadd.f32 %v231, %v295
    %v297 = vpop.f32.mrb[0].mxu0
    %298 = vmatprep.mubr.bf16.mxu0 0
    %299 = vmatmul.mubr.bf16.gmra.mrb[0].mxu0 %v250
    %v300 = vpop.f32.mrb[0].mxu0
    %v301 = vadd.f32 %v231, %v300
    %v302 = vpop.f32.mrb[0].mxu0
    %v303 = vpop.f32.mrb[0].mxu0
    %v304 = vadd.f32 %v231, %v303
    %v305 = vpop.f32.mrb[0].mxu0
    %306 = vmatprep.mubr.bf16.mxu0 0
    %307 = vmatmul.mubr.bf16.gmra.mrb[0].mxu0 %v253
    %v308 = vpop.f32.mrb[0].mxu0
    %v309 = vadd.f32 %v231, %v308
    %v310 = vpop.f32.mrb[0].mxu0
    %v311 = vpop.f32.mrb[0].mxu0
    %v312 = vadd.f32 %v231, %v311
    %v313 = vpop.f32.mrb[0].mxu0
    %314 = vmatprep.mubr.bf16.mxu0 0
    %315 = vmatmul.mubr.bf16.gmra.mrb[0].mxu0 %v256
    %v316 = vpop.f32.mrb[0].mxu0
    %v317 = vadd.f32 %v231, %v316
    %v318 = vpop.f32.mrb[0].mxu0
    %v319 = vpop.f32.mrb[0].mxu0
    %v320 = vadd.f32 %v231, %v319
    %v321 = vpop.f32.mrb[0].mxu0
    %322 = vdwg.mxu0
    %323 = vst [vmem:[#allocation2] sm:$0xff] %v293
    %324 = vst [vmem:[#allocation2 + $0x8] sm:$0xff] %v296
    %325 = vst [vmem:[#allocation2 + $0x10] sm:$0xff] %v301
    %326 = vst [vmem:[#allocation2 + $0x18] sm:$0xff] %v304
    %327 = vst [vmem:[#allocation2 + $0x20] sm:$0xff] %v309
    %328 = vst [vmem:[#allocation2 + $0x28] sm:$0xff] %v312
    %329 = vst [vmem:[#allocation2 + $0x30] sm:$0xff] %v317
    %330 = vst [vmem:[#allocation2 + $0x38] sm:$0xff] %v320
    %s331 = scalar_lea.vmem %s3, 16
    %v332 = vld [vmem:[%s331] sm:$0xf]
    %v333 = vld [vmem:[%s331 + $0x4] sm:$0xf]
    %v334 = vld [vmem:[%s331 + $0x8] sm:$0xf]
    %v335 = vld [vmem:[%s331 + $0xc] sm:$0xf]
    %v336 = vld [vmem:[%s4] sm:$0xf]
    %v337 = vld [vmem:[%s4 + $0x4] sm:$0xf]
    %v338 = vld [vmem:[%s4 + $0x8] sm:$0xf]
    %v339 = vld [vmem:[%s4 + $0xc] sm:$0xf]
    %s340 = scalar_lea.vmem %s4, 16
    %v341 = vld [vmem:[%s340] sm:$0xf]
    %v342 = vld [vmem:[%s340 + $0x4] sm:$0xf]
    %v343 = vld [vmem:[%s340 + $0x8] sm:$0xf]
    %v344 = vld [vmem:[%s340 + $0xc] sm:$0xf]
    %s345 = scalar_lea.vmem [#allocation6], 1
    %v346 = vld [vmem:[%s345] sm:$0x1]
    %v347 = vld [vmem:[%s8] sm:$0xff]
    %s348 = scalar_lea.vmem %s8, 8
    %v349 = vld [vmem:[%s348] sm:$0xff]
    %v350 = vld [vmem:[#allocation9] sm:$0xff]
    %s351 = scalar_lea.vmem [#allocation9], 8
    %v352 = vld [vmem:[%s351] sm:$0xff]
    %v353 = vpack.c.bf16 %v347, %v347
    %v358 = vunpack.c.l.b16 %v336
    %v359 = vunpack.c.l.b16 %v337
    %v360 = vunpack.c.l.b16 %v338
    %v361 = vunpack.c.l.b16 %v339
    %v362 = vpack.c.b16 %v359, %v358
    %v363 = vpack.c.b16 %v361, %v360
    %v367 = vsel %vm245, %v353, 0
    %369 = vmatprep.subr.bf16.mxu0 0
    %370 = vmatpush1.bf16.msra.mxu0 %v362
    %371 = vmatprep.subr.bf16.mxu0 0
    %372 = vmatpush1.bf16.msra.mxu0 %v363
    %373 = vmatprep.subr.bf16.mxu0 0
    %374 = vmatpush1.bf16.msra.mxu0 0
    %375 = vmatprep.subr.bf16.mxu0 0
    %376 = vmatpush1.bf16.msra.mxu0 0
    %377 = vmatprep.subr.bf16.mxu0 0
    %378 = vmatpush1.bf16.msra.mxu0 0
    %379 = vmatprep.subr.bf16.mxu0 0
    %380 = vmatpush1.bf16.msra.mxu0 0
    %381 = vmatprep.subr.bf16.mxu0 0
    %382 = vmatpush1.bf16.msra.mxu0 0
    %383 = vmatprep.subr.bf16.mxu0 0
    %384 = vmatpush1.bf16.msra.mxu0 0
    %385 = vmatprep.subr.bf16.mxu0 0
    %386 = vmatpush1.bf16.msra.mxu0 0
    %387 = vmatprep.subr.bf16.mxu0 0
    %388 = vmatpush1.bf16.msra.mxu0 0
    %389 = vmatprep.subr.bf16.mxu0 0
    %390 = vmatpush1.bf16.msra.mxu0 0
    %391 = vmatprep.subr.bf16.mxu0 0
    %392 = vmatpush1.bf16.msra.mxu0 0
    %393 = vmatprep.subr.bf16.mxu0 0
    %394 = vmatpush1.bf16.msra.mxu0 0
    %395 = vmatprep.subr.bf16.mxu0 0
    %396 = vmatpush1.bf16.msra.mxu0 0
    %397 = vmatprep.subr.bf16.mxu0 0
    %398 = vmatpush1.bf16.msra.mxu0 0
    %399 = vmatprep.subr.bf16.mxu0 0
    %400 = vmatpush1.bf16.msra.mxu0 0
    %401 = vmatprep.mubr.bf16.mxu0 0
    %402 = vmatmul.mubr.bf16.gmra.mrb[0].mxu0 %v367
    %v403 = vpop.f32.mrb[0].mxu0
    %v404 = vadd.f32 0.0, %v403
    %v405 = vpop.f32.mrb[0].mxu0
    %v406 = vpop.f32.mrb[0].mxu0
    %v407 = vpop.f32.mrb[0].mxu0
    %408 = vdwg.mxu0
    %v409 = vld [vmem:[#allocation2] sm:$0xff]
    %v410 = vadd.f32 %v409, %v404
    %v411 = vxor.u32 %v410, 2147483648
    %v412 = vmul.f32 %v411, 1.442695
    %v413 = vpow.pop %v412
    %v414 = vadd.f32 %v413, 1.0
    %v415 = vrcp.pop %v414
    %v416 = vmul.f32 1.0, %v415
    %v417 = vmul.f32 %v416, 2.0
    %v418 = vsub.f32 %v417, 1.0
    %420 = vrot.lane.b32.xlu0 %v350, 32
    %v421 = vpop.permute.xlu0 %420
    %v423 = vmul.f32 %v416, %v421
    %425 = vrot.lane.b32.xlu0 %v418, 64
    %v426 = vpop.permute.xlu0 %425
    %v428 = vmul.f32 %v416, %v426
    %430 = vrot.lane.b32.xlu0 %v428, 32
    %v431 = vpop.permute.xlu0 %430
    %v433 = vadd.f32 %v423, %v431
    %v434 = vtanh.pop %v433
    %436 = vrot.lane.b32.xlu0 %v434, 64
    %v437 = vpop.permute.xlu0 %436
    %v439 = vmul.f32 %v416, %v437
    %v440 = vpack.c.bf16 %v439, %v439
    %442 = vrot.lane.b32.xlu0 %v440, 32
    %v443 = vpop.permute.xlu0 %442
    %v445 = vsel %vm245, %v443, 0
    %447 = vmatprep.subr.bf16.mxu0 0
    %448 = vmatpush1.bf16.msra.mxu0 %v362
    %449 = vmatprep.subr.bf16.mxu0 0
    %450 = vmatpush1.bf16.msra.mxu0 %v363
    %451 = vmatprep.subr.bf16.mxu0 0
    %452 = vmatpush1.bf16.msra.mxu0 0
    %453 = vmatprep.subr.bf16.mxu0 0
    %454 = vmatpush1.bf16.msra.mxu0 0
    %455 = vmatprep.subr.bf16.mxu0 0
    %456 = vmatpush1.bf16.msra.mxu0 0
    %457 = vmatprep.subr.bf16.mxu0 0
    %458 = vmatpush1.bf16.msra.mxu0 0
    %459 = vmatprep.subr.bf16.mxu0 0
    %460 = vmatpush1.bf16.msra.mxu0 0
    %461 = vmatprep.subr.bf16.mxu0 0
    %462 = vmatpush1.bf16.msra.mxu0 0
    %463 = vmatprep.subr.bf16.mxu0 0
    %464 = vmatpush1.bf16.msra.mxu0 0
    %465 = vmatprep.subr.bf16.mxu0 0
    %466 = vmatpush1.bf16.msra.mxu0 0
    %467 = vmatprep.subr.bf16.mxu0 0
    %468 = vmatpush1.bf16.msra.mxu0 0
    %469 = vmatprep.subr.bf16.mxu0 0
    %470 = vmatpush1.bf16.msra.mxu0 0
    %471 = vmatprep.subr.bf16.mxu0 0
    %472 = vmatpush1.bf16.msra.mxu0 0
    %473 = vmatprep.subr.bf16.mxu0 0
    %474 = vmatpush1.bf16.msra.mxu0 0
    %475 = vmatprep.subr.bf16.mxu0 0
    %476 = vmatpush1.bf16.msra.mxu0 0
    %477 = vmatprep.subr.bf16.mxu0 0
    %478 = vmatpush1.bf16.msra.mxu0 0
    %479 = vmatprep.mubr.bf16.mxu0 0
    %480 = vmatmul.mubr.bf16.gmra.mrb[0].mxu0 %v445
    %v481 = vpop.f32.mrb[0].mxu0
    %v482 = vadd.f32 0.0, %v481
    %v483 = vpop.f32.mrb[0].mxu0
    %v484 = vpop.f32.mrb[0].mxu0
    %v485 = vpop.f32.mrb[0].mxu0
    %486 = vdwg.mxu0
    %s487 = scalar_lea.vmem [#allocation2], 8
    %v488 = vld [vmem:[%s487] sm:$0xff]
    %v489 = vadd.f32 %v488, %v482
    %v490 = vxor.u32 %v489, 2147483648
    %v491 = vmul.f32 %v490, 1.442695
    %v492 = vpow.pop %v491
    %v493 = vadd.f32 %v492, 1.0
    %v494 = vrcp.pop %v493
    %v495 = vmul.f32 1.0, %v494
    %v496 = vmul.f32 %v495, 2.0
    %v497 = vsub.f32 %v496, 1.0
    %v498 = vmul.f32 %v495, %v433
    %500 = vrot.lane.b32.xlu0 %v497, 64
    %v501 = vpop.permute.xlu0 %500
    %v503 = vmul.f32 %v495, %v501
    %505 = vrot.lane.b32.xlu0 %v503, 32
    %v506 = vpop.permute.xlu0 %505
    %v508 = vadd.f32 %v498, %v506
    %v509 = vtanh.pop %v508
    %511 = vrot.lane.b32.xlu0 %v509, 64
    %v512 = vpop.permute.xlu0 %511
    %v514 = vmul.f32 %v495, %v512
    %v515 = vpack.c.bf16 %v349, %v349
    %v520 = vunpack.c.l.b16 %v341
    %v521 = vunpack.c.l.b16 %v342
    %v522 = vunpack.c.l.b16 %v343
    %v523 = vunpack.c.l.b16 %v344
    %v524 = vpack.c.b16 %v521, %v520
    %v525 = vpack.c.b16 %v523, %v522
    %v529 = vsel %vm245, %v515, 0
    %531 = vmatprep.subr.bf16.mxu0 0
    %532 = vmatpush1.bf16.msra.mxu0 %v524
    %533 = vmatprep.subr.bf16.mxu0 0
    %534 = vmatpush1.bf16.msra.mxu0 %v525
    %535 = vmatprep.subr.bf16.mxu0 0
    %536 = vmatpush1.bf16.msra.mxu0 0
    %537 = vmatprep.subr.bf16.mxu0 0
    %538 = vmatpush1.bf16.msra.mxu0 0
    %539 = vmatprep.subr.bf16.mxu0 0
    %540 = vmatpush1.bf16.msra.mxu0 0
    %541 = vmatprep.subr.bf16.mxu0 0
    %542 = vmatpush1.bf16.msra.mxu0 0
    %543 = vmatprep.subr.bf16.mxu0 0
    %544 = vmatpush1.bf16.msra.mxu0 0
    %545 = vmatprep.subr.bf16.mxu0 0
    %546 = vmatpush1.bf16.msra.mxu0 0
    %547 = vmatprep.subr.bf16.mxu0 0
    %548 = vmatpush1.bf16.msra.mxu0 0
    %549 = vmatprep.subr.bf16.mxu0 0
    %550 = vmatpush1.bf16.msra.mxu0 0
    %551 = vmatprep.subr.bf16.mxu0 0
    %552 = vmatpush1.bf16.msra.mxu0 0
    %553 = vmatprep.subr.bf16.mxu0 0
    %554 = vmatpush1.bf16.msra.mxu0 0
    %555 = vmatprep.subr.bf16.mxu0 0
    %556 = vmatpush1.bf16.msra.mxu0 0
    %557 = vmatprep.subr.bf16.mxu0 0
    %558 = vmatpush1.bf16.msra.mxu0 0
    %559 = vmatprep.subr.bf16.mxu0 0
    %560 = vmatpush1.bf16.msra.mxu0 0
    %561 = vmatprep.subr.bf16.mxu0 0
    %562 = vmatpush1.bf16.msra.mxu0 0
    %563 = vmatprep.mubr.bf16.mxu0 0
    %564 = vmatmul.mubr.bf16.gmra.mrb[0].mxu0 %v529
    %v565 = vpop.f32.mrb[0].mxu0
    %v566 = vadd.f32 0.0, %v565
    %v567 = vpop.f32.mrb[0].mxu0
    %v568 = vpop.f32.mrb[0].mxu0
    %v569 = vpop.f32.mrb[0].mxu0
    %570 = vdwg.mxu0
    %v575 = vunpack.c.l.b16 %v332
    %v576 = vunpack.c.l.b16 %v333
    %v577 = vunpack.c.l.b16 %v334
    %v578 = vunpack.c.l.b16 %v335
    %v579 = vpack.c.b16 %v576, %v575
    %v580 = vpack.c.b16 %v578, %v577
    %583 = vmatprep.subr.bf16.mxu0 0
    %584 = vmatpush1.bf16.msra.mxu0 %v579
    %585 = vmatprep.subr.bf16.mxu0 0
    %586 = vmatpush1.bf16.msra.mxu0 %v580
    %587 = vmatprep.subr.bf16.mxu0 0
    %588 = vmatpush1.bf16.msra.mxu0 0
    %589 = vmatprep.subr.bf16.mxu0 0
    %590 = vmatpush1.bf16.msra.mxu0 0
    %591 = vmatprep.subr.bf16.mxu0 0
    %592 = vmatpush1.bf16.msra.mxu0 0
    %593 = vmatprep.subr.bf16.mxu0 0
    %594 = vmatpush1.bf16.msra.mxu0 0
    %595 = vmatprep.subr.bf16.mxu0 0
    %596 = vmatpush1.bf16.msra.mxu0 0
    %597 = vmatprep.subr.bf16.mxu0 0
    %598 = vmatpush1.bf16.msra.mxu0 0
    %599 = vmatprep.subr.bf16.mxu0 0
    %600 = vmatpush1.bf16.msra.mxu0 0
    %601 = vmatprep.subr.bf16.mxu0 0
    %602 = vmatpush1.bf16.msra.mxu0 0
    %603 = vmatprep.subr.bf16.mxu0 0
    %604 = vmatpush1.bf16.msra.mxu0 0
    %605 = vmatprep.subr.bf16.mxu0 0
    %606 = vmatpush1.bf16.msra.mxu0 0
    %607 = vmatprep.subr.bf16.mxu0 0
    %608 = vmatpush1.bf16.msra.mxu0 0
    %609 = vmatprep.subr.bf16.mxu0 0
    %610 = vmatpush1.bf16.msra.mxu0 0
    %611 = vmatprep.subr.bf16.mxu0 0
    %612 = vmatpush1.bf16.msra.mxu0 0
    %613 = vmatprep.subr.bf16.mxu0 0
    %614 = vmatpush1.bf16.msra.mxu0 0
    %615 = vmatprep.mubr.bf16.mxu0 0
    %616 = vmatmul.mubr.bf16.gmra.mrb[0].mxu0 %v445
    %v617 = vpop.f32.mrb[0].mxu0
    %v618 = vadd.f32 %v566, %v617
    %v619 = vpop.f32.mrb[0].mxu0
    %v620 = vpop.f32.mrb[0].mxu0
    %v621 = vpop.f32.mrb[0].mxu0
    %622 = vdwg.mxu0
    %v624 = vlaneseq
    %v625 = vshrl.u32 %v624, 7
    %v626 = vsub.s32 0, %v625
    %v627 = vrot.slane %v346, %v626
    %v629 = vadd.f32 %v618, %v627
    %v630 = vxor.u32 %v629, 2147483648
    %v631 = vmul.f32 %v630, 1.442695
    %v632 = vpow.pop %v631
    %v633 = vadd.f32 %v632, 1.0
    %v634 = vrcp.pop %v633
    %v635 = vmul.f32 1.0, %v634
    %v636 = vmul.f32 %v635, 2.0
    %v637 = vsub.f32 %v636, 1.0
    %639 = vrot.lane.b32.xlu0 %v352, 32
    %v640 = vpop.permute.xlu0 %639
    %v642 = vmul.f32 %v635, %v640
    %644 = vrot.lane.b32.xlu0 %v637, 64
    %v645 = vpop.permute.xlu0 %644
    %v647 = vmul.f32 %v635, %v645
    %649 = vrot.lane.b32.xlu0 %v647, 32
    %v650 = vpop.permute.xlu0 %649
    %v652 = vadd.f32 %v642, %v650
    %v653 = vtanh.pop %v652
    %655 = vrot.lane.b32.xlu0 %v653, 64
    %v656 = vpop.permute.xlu0 %655
    %v658 = vmul.f32 %v635, %v656
    %v659 = vpack.c.bf16 %v514, %v514
    %661 = vrot.lane.b32.xlu0 %v659, 32
    %v662 = vpop.permute.xlu0 %661
    %v664 = vsel %vm245, %v662, 0
    %666 = vmatprep.subr.bf16.mxu0 0
    %667 = vmatpush1.bf16.msra.mxu0 %v362
    %668 = vmatprep.subr.bf16.mxu0 0
    %669 = vmatpush1.bf16.msra.mxu0 %v363
    %670 = vmatprep.subr.bf16.mxu0 0
    %671 = vmatpush1.bf16.msra.mxu0 0
    %672 = vmatprep.subr.bf16.mxu0 0
    %673 = vmatpush1.bf16.msra.mxu0 0
    %674 = vmatprep.subr.bf16.mxu0 0
    %675 = vmatpush1.bf16.msra.mxu0 0
    %676 = vmatprep.subr.bf16.mxu0 0
    %677 = vmatpush1.bf16.msra.mxu0 0
    %678 = vmatprep.subr.bf16.mxu0 0
    %679 = vmatpush1.bf16.msra.mxu0 0
    %680 = vmatprep.subr.bf16.mxu0 0
    %681 = vmatpush1.bf16.msra.mxu0 0
    %682 = vmatprep.subr.bf16.mxu0 0
    %683 = vmatpush1.bf16.msra.mxu0 0
    %684 = vmatprep.subr.bf16.mxu0 0
    %685 = vmatpush1.bf16.msra.mxu0 0
    %686 = vmatprep.subr.bf16.mxu0 0
    %687 = vmatpush1.bf16.msra.mxu0 0
    %688 = vmatprep.subr.bf16.mxu0 0
    %689 = vmatpush1.bf16.msra.mxu0 0
    %690 = vmatprep.subr.bf16.mxu0 0
    %691 = vmatpush1.bf16.msra.mxu0 0
    %692 = vmatprep.subr.bf16.mxu0 0
    %693 = vmatpush1.bf16.msra.mxu0 0
    %694 = vmatprep.subr.bf16.mxu0 0
    %695 = vmatpush1.bf16.msra.mxu0 0
    %696 = vmatprep.subr.bf16.mxu0 0
    %697 = vmatpush1.bf16.msra.mxu0 0
    %698 = vmatprep.mubr.bf16.mxu0 0
    %699 = vmatmul.mubr.bf16.gmra.mrb[0].mxu0 %v664
    %v700 = vpop.f32.mrb[0].mxu0
    %v701 = vadd.f32 0.0, %v700
    %v702 = vpop.f32.mrb[0].mxu0
    %v703 = vpop.f32.mrb[0].mxu0
    %v704 = vpop.f32.mrb[0].mxu0
    %705 = vdwg.mxu0
    %s706 = scalar_lea.vmem [#allocation2], 16
    %v707 = vld [vmem:[%s706] sm:$0xff]
    %v708 = vadd.f32 %v707, %v701
    %v709 = vxor.u32 %v708, 2147483648
    %v710 = vmul.f32 %v709, 1.442695
    %v711 = vpow.pop %v710
    %v712 = vadd.f32 %v711, 1.0
    %v713 = vrcp.pop %v712
    %v714 = vmul.f32 1.0, %v713
    %v715 = vmul.f32 %v714, 2.0
    %v716 = vsub.f32 %v715, 1.0
    %v717 = vmul.f32 %v714, %v508
    %719 = vrot.lane.b32.xlu0 %v716, 64
    %v720 = vpop.permute.xlu0 %719
    %v722 = vmul.f32 %v714, %v720
    %724 = vrot.lane.b32.xlu0 %v722, 32
    %v725 = vpop.permute.xlu0 %724
    %v727 = vadd.f32 %v717, %v725
    %v728 = vtanh.pop %v727
    %730 = vrot.lane.b32.xlu0 %v728, 64
    %v731 = vpop.permute.xlu0 %730
    %v733 = vmul.f32 %v714, %v731
    %v734 = vpack.c.bf16 %v658, %v658
    %736 = vrot.lane.b32.xlu0 %v734, 32
    %v737 = vpop.permute.xlu0 %736
    %v739 = vsel %vm245, %v737, 0
    %741 = vmatprep.subr.bf16.mxu0 0
    %742 = vmatpush1.bf16.msra.mxu0 %v524
    %743 = vmatprep.subr.bf16.mxu0 0
    %744 = vmatpush1.bf16.msra.mxu0 %v525
    %745 = vmatprep.subr.bf16.mxu0 0
    %746 = vmatpush1.bf16.msra.mxu0 0
    %747 = vmatprep.subr.bf16.mxu0 0
    %748 = vmatpush1.bf16.msra.mxu0 0
    %749 = vmatprep.subr.bf16.mxu0 0
    %750 = vmatpush1.bf16.msra.mxu0 0
    %751 = vmatprep.subr.bf16.mxu0 0
    %752 = vmatpush1.bf16.msra.mxu0 0
    %753 = vmatprep.subr.bf16.mxu0 0
    %754 = vmatpush1.bf16.msra.mxu0 0
    %755 = vmatprep.subr.bf16.mxu0 0
    %756 = vmatpush1.bf16.msra.mxu0 0
    %757 = vmatprep.subr.bf16.mxu0 0
    %758 = vmatpush1.bf16.msra.mxu0 0
    %759 = vmatprep.subr.bf16.mxu0 0
    %760 = vmatpush1.bf16.msra.mxu0 0
    %761 = vmatprep.subr.bf16.mxu0 0
    %762 = vmatpush1.bf16.msra.mxu0 0
    %763 = vmatprep.subr.bf16.mxu0 0
    %764 = vmatpush1.bf16.msra.mxu0 0
    %765 = vmatprep.subr.bf16.mxu0 0
    %766 = vmatpush1.bf16.msra.mxu0 0
    %767 = vmatprep.subr.bf16.mxu0 0
    %768 = vmatpush1.bf16.msra.mxu0 0
    %769 = vmatprep.subr.bf16.mxu0 0
    %770 = vmatpush1.bf16.msra.mxu0 0
    %771 = vmatprep.subr.bf16.mxu0 0
    %772 = vmatpush1.bf16.msra.mxu0 0
    %773 = vmatprep.mubr.bf16.mxu0 0
    %774 = vmatmul.mubr.bf16.gmra.mrb[0].mxu0 %v739
    %v775 = vpop.f32.mrb[0].mxu0
    %v776 = vadd.f32 0.0, %v775
    %v777 = vpop.f32.mrb[0].mxu0
    %v778 = vpop.f32.mrb[0].mxu0
    %v779 = vpop.f32.mrb[0].mxu0
    %780 = vdwg.mxu0
    %781 = vmatprep.subr.bf16.mxu0 0
    %782 = vmatpush1.bf16.msra.mxu0 %v579
    %783 = vmatprep.subr.bf16.mxu0 0
    %784 = vmatpush1.bf16.msra.mxu0 %v580
    %785 = vmatprep.subr.bf16.mxu0 0
    %786 = vmatpush1.bf16.msra.mxu0 0
    %787 = vmatprep.subr.bf16.mxu0 0
    %788 = vmatpush1.bf16.msra.mxu0 0
    %789 = vmatprep.subr.bf16.mxu0 0
    %790 = vmatpush1.bf16.msra.mxu0 0
    %791 = vmatprep.subr.bf16.mxu0 0
    %792 = vmatpush1.bf16.msra.mxu0 0
    %793 = vmatprep.subr.bf16.mxu0 0
    %794 = vmatpush1.bf16.msra.mxu0 0
    %795 = vmatprep.subr.bf16.mxu0 0
    %796 = vmatpush1.bf16.msra.mxu0 0
    %797 = vmatprep.subr.bf16.mxu0 0
    %798 = vmatpush1.bf16.msra.mxu0 0
    %799 = vmatprep.subr.bf16.mxu0 0
    %800 = vmatpush1.bf16.msra.mxu0 0
    %801 = vmatprep.subr.bf16.mxu0 0
    %802 = vmatpush1.bf16.msra.mxu0 0
    %803 = vmatprep.subr.bf16.mxu0 0
    %804 = vmatpush1.bf16.msra.mxu0 0
    %805 = vmatprep.subr.bf16.mxu0 0
    %806 = vmatpush1.bf16.msra.mxu0 0
    %807 = vmatprep.subr.bf16.mxu0 0
    %808 = vmatpush1.bf16.msra.mxu0 0
    %809 = vmatprep.subr.bf16.mxu0 0
    %810 = vmatpush1.bf16.msra.mxu0 0
    %811 = vmatprep.subr.bf16.mxu0 0
    %812 = vmatpush1.bf16.msra.mxu0 0
    %813 = vmatprep.mubr.bf16.mxu0 0
    %814 = vmatmul.mubr.bf16.gmra.mrb[0].mxu0 %v664
    %v815 = vpop.f32.mrb[0].mxu0
    %v816 = vadd.f32 %v776, %v815
    %v817 = vpop.f32.mrb[0].mxu0
    %v818 = vpop.f32.mrb[0].mxu0
    %v819 = vpop.f32.mrb[0].mxu0
    %820 = vdwg.mxu0
    %v821 = vadd.f32 %v816, %v627
    %v822 = vxor.u32 %v821, 2147483648
    %v823 = vmul.f32 %v822, 1.442695
    %v824 = vpow.pop %v823
    %v825 = vadd.f32 %v824, 1.0
    %v826 = vrcp.pop %v825
    %v827 = vmul.f32 1.0, %v826
    %v828 = vmul.f32 %v827, 2.0
    %v829 = vsub.f32 %v828, 1.0
    %v830 = vmul.f32 %v827, %v652
    %832 = vrot.lane.b32.xlu0 %v829, 64
    %v833 = vpop.permute.xlu0 %832
    %v835 = vmul.f32 %v827, %v833
    %837 = vrot.lane.b32.xlu0 %v835, 32
    %v838 = vpop.permute.xlu0 %837
    %v840 = vadd.f32 %v830, %v838
    %v841 = vtanh.pop %v840
    %843 = vrot.lane.b32.xlu0 %v841, 64
    %v844 = vpop.permute.xlu0 %843
    %v846 = vmul.f32 %v827, %v844
    %v847 = vpack.c.bf16 %v733, %v733
    %849 = vrot.lane.b32.xlu0 %v847, 32
    %v850 = vpop.permute.xlu0 %849
    %v852 = vsel %vm245, %v850, 0
    %854 = vmatprep.subr.bf16.mxu0 0
    %855 = vmatpush1.bf16.msra.mxu0 %v362
    %856 = vmatprep.subr.bf16.mxu0 0
    %857 = vmatpush1.bf16.msra.mxu0 %v363
    %858 = vmatprep.subr.bf16.mxu0 0
    %859 = vmatpush1.bf16.msra.mxu0 0
    %860 = vmatprep.subr.bf16.mxu0 0
    %861 = vmatpush1.bf16.msra.mxu0 0
    %862 = vmatprep.subr.bf16.mxu0 0
    %863 = vmatpush1.bf16.msra.mxu0 0
    %864 = vmatprep.subr.bf16.mxu0 0
    %865 = vmatpush1.bf16.msra.mxu0 0
    %866 = vmatprep.subr.bf16.mxu0 0
    %867 = vmatpush1.bf16.msra.mxu0 0
    %868 = vmatprep.subr.bf16.mxu0 0
    %869 = vmatpush1.bf16.msra.mxu0 0
    %870 = vmatprep.subr.bf16.mxu0 0
    %871 = vmatpush1.bf16.msra.mxu0 0
    %872 = vmatprep.subr.bf16.mxu0 0
    %873 = vmatpush1.bf16.msra.mxu0 0
    %874 = vmatprep.subr.bf16.mxu0 0
    %875 = vmatpush1.bf16.msra.mxu0 0
    %876 = vmatprep.subr.bf16.mxu0 0
    %877 = vmatpush1.bf16.msra.mxu0 0
    %878 = vmatprep.subr.bf16.mxu0 0
    %879 = vmatpush1.bf16.msra.mxu0 0
    %880 = vmatprep.subr.bf16.mxu0 0
    %881 = vmatpush1.bf16.msra.mxu0 0
    %882 = vmatprep.subr.bf16.mxu0 0
    %883 = vmatpush1.bf16.msra.mxu0 0
    %884 = vmatprep.subr.bf16.mxu0 0
    %885 = vmatpush1.bf16.msra.mxu0 0
    %886 = vmatprep.mubr.bf16.mxu0 0
    %887 = vmatmul.mubr.bf16.gmra.mrb[0].mxu0 %v852
    %v888 = vpop.f32.mrb[0].mxu0
    %v889 = vadd.f32 0.0, %v888
    %v890 = vpop.f32.mrb[0].mxu0
    %v891 = vpop.f32.mrb[0].mxu0
    %v892 = vpop.f32.mrb[0].mxu0
    %893 = vdwg.mxu0
    %s894 = scalar_lea.vmem [#allocation2], 24
    %v895 = vld [vmem:[%s894] sm:$0xff]
    %v896 = vadd.f32 %v895, %v889
    %v897 = vxor.u32 %v896, 2147483648
    %v898 = vmul.f32 %v897, 1.442695
    %v899 = vpow.pop %v898
    %v900 = vadd.f32 %v899, 1.0
    %v901 = vrcp.pop %v900
    %v902 = vmul.f32 1.0, %v901
    %v903 = vmul.f32 %v902, 2.0
    %v904 = vsub.f32 %v903, 1.0
    %v905 = vmul.f32 %v902, %v727
    %907 = vrot.lane.b32.xlu0 %v904, 64
    %v908 = vpop.permute.xlu0 %907
    %v910 = vmul.f32 %v902, %v908
    %912 = vrot.lane.b32.xlu0 %v910, 32
    %v913 = vpop.permute.xlu0 %912
    %v915 = vadd.f32 %v905, %v913
    %v916 = vtanh.pop %v915
    %918 = vrot.lane.b32.xlu0 %v916, 64
    %v919 = vpop.permute.xlu0 %918
    %v921 = vmul.f32 %v902, %v919
    %v922 = vpack.c.bf16 %v846, %v846
    %924 = vrot.lane.b32.xlu0 %v922, 32
    %v925 = vpop.permute.xlu0 %924
    %v927 = vsel %vm245, %v925, 0
    %929 = vmatprep.subr.bf16.mxu0 0
    %930 = vmatpush1.bf16.msra.mxu0 %v524
    %931 = vmatprep.subr.bf16.mxu0 0
    %932 = vmatpush1.bf16.msra.mxu0 %v525
    %933 = vmatprep.subr.bf16.mxu0 0
    %934 = vmatpush1.bf16.msra.mxu0 0
    %935 = vmatprep.subr.bf16.mxu0 0
    %936 = vmatpush1.bf16.msra.mxu0 0
    %937 = vmatprep.subr.bf16.mxu0 0
    %938 = vmatpush1.bf16.msra.mxu0 0
    %939 = vmatprep.subr.bf16.mxu0 0
    %940 = vmatpush1.bf16.msra.mxu0 0
    %941 = vmatprep.subr.bf16.mxu0 0
    %942 = vmatpush1.bf16.msra.mxu0 0
    %943 = vmatprep.subr.bf16.mxu0 0
    %944 = vmatpush1.bf16.msra.mxu0 0
    %945 = vmatprep.subr.bf16.mxu0 0
    %946 = vmatpush1.bf16.msra.mxu0 0
    %947 = vmatprep.subr.bf16.mxu0 0
    %948 = vmatpush1.bf16.msra.mxu0 0
    %949 = vmatprep.subr.bf16.mxu0 0
    %950 = vmatpush1.bf16.msra.mxu0 0
    %951 = vmatprep.subr.bf16.mxu0 0
    %952 = vmatpush1.bf16.msra.mxu0 0
    %953 = vmatprep.subr.bf16.mxu0 0
    %954 = vmatpush1.bf16.msra.mxu0 0
    %955 = vmatprep.subr.bf16.mxu0 0
    %956 = vmatpush1.bf16.msra.mxu0 0
    %957 = vmatprep.subr.bf16.mxu0 0
    %958 = vmatpush1.bf16.msra.mxu0 0
    %959 = vmatprep.subr.bf16.mxu0 0
    %960 = vmatpush1.bf16.msra.mxu0 0
    %961 = vmatprep.mubr.bf16.mxu0 0
    %962 = vmatmul.mubr.bf16.gmra.mrb[0].mxu0 %v927
    %v963 = vpop.f32.mrb[0].mxu0
    %v964 = vadd.f32 0.0, %v963
    %v965 = vpop.f32.mrb[0].mxu0
    %v966 = vpop.f32.mrb[0].mxu0
    %v967 = vpop.f32.mrb[0].mxu0
    %968 = vdwg.mxu0
    %969 = vmatprep.subr.bf16.mxu0 0
    %970 = vmatpush1.bf16.msra.mxu0 %v579
    %971 = vmatprep.subr.bf16.mxu0 0
    %972 = vmatpush1.bf16.msra.mxu0 %v580
    %973 = vmatprep.subr.bf16.mxu0 0
    %974 = vmatpush1.bf16.msra.mxu0 0
    %975 = vmatprep.subr.bf16.mxu0 0
    %976 = vmatpush1.bf16.msra.mxu0 0
    %977 = vmatprep.subr.bf16.mxu0 0
    %978 = vmatpush1.bf16.msra.mxu0 0
    %979 = vmatprep.subr.bf16.mxu0 0
    %980 = vmatpush1.bf16.msra.mxu0 0
    %981 = vmatprep.subr.bf16.mxu0 0
    %982 = vmatpush1.bf16.msra.mxu0 0
    %983 = vmatprep.subr.bf16.mxu0 0
    %984 = vmatpush1.bf16.msra.mxu0 0
    %985 = vmatprep.subr.bf16.mxu0 0
    %986 = vmatpush1.bf16.msra.mxu0 0
    %987 = vmatprep.subr.bf16.mxu0 0
    %988 = vmatpush1.bf16.msra.mxu0 0
    %989 = vmatprep.subr.bf16.mxu0 0
    %990 = vmatpush1.bf16.msra.mxu0 0
    %991 = vmatprep.subr.bf16.mxu0 0
    %992 = vmatpush1.bf16.msra.mxu0 0
    %993 = vmatprep.subr.bf16.mxu0 0
    %994 = vmatpush1.bf16.msra.mxu0 0
    %995 = vmatprep.subr.bf16.mxu0 0
    %996 = vmatpush1.bf16.msra.mxu0 0
    %997 = vmatprep.subr.bf16.mxu0 0
    %998 = vmatpush1.bf16.msra.mxu0 0
    %999 = vmatprep.subr.bf16.mxu0 0
    %1000 = vmatpush1.bf16.msra.mxu0 0
    %1001 = vmatprep.mubr.bf16.mxu0 0
    %1002 = vmatmul.mubr.bf16.gmra.mrb[0].mxu0 %v852
    %v1003 = vpop.f32.mrb[0].mxu0
    %v1004 = vadd.f32 %v964, %v1003
    %v1005 = vpop.f32.mrb[0].mxu0
    %v1006 = vpop.f32.mrb[0].mxu0
    %v1007 = vpop.f32.mrb[0].mxu0
    %1008 = vdwg.mxu0
    %v1009 = vadd.f32 %v1004, %v627
    %v1010 = vxor.u32 %v1009, 2147483648
    %v1011 = vmul.f32 %v1010, 1.442695
    %v1012 = vpow.pop %v1011
    %v1013 = vadd.f32 %v1012, 1.0
    %v1014 = vrcp.pop %v1013
    %v1015 = vmul.f32 1.0, %v1014
    %v1016 = vmul.f32 %v1015, 2.0
    %v1017 = vsub.f32 %v1016, 1.0
    %v1018 = vmul.f32 %v1015, %v840
    %1020 = vrot.lane.b32.xlu0 %v1017, 64
    %v1021 = vpop.permute.xlu0 %1020
    %v1023 = vmul.f32 %v1015, %v1021
    %1025 = vrot.lane.b32.xlu0 %v1023, 32
    %v1026 = vpop.permute.xlu0 %1025
    %v1028 = vadd.f32 %v1018, %v1026
    %v1029 = vtanh.pop %v1028
    %1031 = vrot.lane.b32.xlu0 %v1029, 64
    %v1032 = vpop.permute.xlu0 %1031
    %v1034 = vmul.f32 %v1015, %v1032
    %v1035 = vpack.c.bf16 %v921, %v921
    %1037 = vrot.lane.b32.xlu0 %v1035, 32
    %v1038 = vpop.permute.xlu0 %1037
    %v1040 = vsel %vm245, %v1038, 0
    %1042 = vmatprep.subr.bf16.mxu0 0
    %1043 = vmatpush1.bf16.msra.mxu0 %v362
    %1044 = vmatprep.subr.bf16.mxu0 0
    %1045 = vmatpush1.bf16.msra.mxu0 %v363
    %1046 = vmatprep.subr.bf16.mxu0 0
    %1047 = vmatpush1.bf16.msra.mxu0 0
    %1048 = vmatprep.subr.bf16.mxu0 0
    %1049 = vmatpush1.bf16.msra.mxu0 0
    %1050 = vmatprep.subr.bf16.mxu0 0
    %1051 = vmatpush1.bf16.msra.mxu0 0
    %1052 = vmatprep.subr.bf16.mxu0 0
    %1053 = vmatpush1.bf16.msra.mxu0 0
    %1054 = vmatprep.subr.bf16.mxu0 0
    %1055 = vmatpush1.bf16.msra.mxu0 0
    %1056 = vmatprep.subr.bf16.mxu0 0
    %1057 = vmatpush1.bf16.msra.mxu0 0
    %1058 = vmatprep.subr.bf16.mxu0 0
    %1059 = vmatpush1.bf16.msra.mxu0 0
    %1060 = vmatprep.subr.bf16.mxu0 0
    %1061 = vmatpush1.bf16.msra.mxu0 0
    %1062 = vmatprep.subr.bf16.mxu0 0
    %1063 = vmatpush1.bf16.msra.mxu0 0
    %1064 = vmatprep.subr.bf16.mxu0 0
    %1065 = vmatpush1.bf16.msra.mxu0 0
    %1066 = vmatprep.subr.bf16.mxu0 0
    %1067 = vmatpush1.bf16.msra.mxu0 0
    %1068 = vmatprep.subr.bf16.mxu0 0
    %1069 = vmatpush1.bf16.msra.mxu0 0
    %1070 = vmatprep.subr.bf16.mxu0 0
    %1071 = vmatpush1.bf16.msra.mxu0 0
    %1072 = vmatprep.subr.bf16.mxu0 0
    %1073 = vmatpush1.bf16.msra.mxu0 0
    %1074 = vmatprep.mubr.bf16.mxu0 0
    %1075 = vmatmul.mubr.bf16.gmra.mrb[0].mxu0 %v1040
    %v1076 = vpop.f32.mrb[0].mxu0
    %v1077 = vadd.f32 0.0, %v1076
    %v1078 = vpop.f32.mrb[0].mxu0
    %v1079 = vpop.f32.mrb[0].mxu0
    %v1080 = vpop.f32.mrb[0].mxu0
    %1081 = vdwg.mxu0
    %s1082 = scalar_lea.vmem [#allocation2], 32
    %v1083 = vld [vmem:[%s1082] sm:$0xff]
    %v1084 = vadd.f32 %v1083, %v1077
    %v1085 = vxor.u32 %v1084, 2147483648
    %v1086 = vmul.f32 %v1085, 1.442695
    %v1087 = vpow.pop %v1086
    %v1088 = vadd.f32 %v1087, 1.0
    %v1089 = vrcp.pop %v1088
    %v1090 = vmul.f32 1.0, %v1089
    %v1091 = vmul.f32 %v1090, 2.0
    %v1092 = vsub.f32 %v1091, 1.0
    %v1093 = vmul.f32 %v1090, %v915
    %1095 = vrot.lane.b32.xlu0 %v1092, 64
    %v1096 = vpop.permute.xlu0 %1095
    %v1098 = vmul.f32 %v1090, %v1096
    %1100 = vrot.lane.b32.xlu0 %v1098, 32
    %v1101 = vpop.permute.xlu0 %1100
    %v1103 = vadd.f32 %v1093, %v1101
    %v1104 = vtanh.pop %v1103
    %1106 = vrot.lane.b32.xlu0 %v1104, 64
    %v1107 = vpop.permute.xlu0 %1106
    %v1109 = vmul.f32 %v1090, %v1107
    %v1110 = vpack.c.bf16 %v1034, %v1034
    %1112 = vrot.lane.b32.xlu0 %v1110, 32
    %v1113 = vpop.permute.xlu0 %1112
    %v1115 = vsel %vm245, %v1113, 0
    %1117 = vmatprep.subr.bf16.mxu0 0
    %1118 = vmatpush1.bf16.msra.mxu0 %v524
    %1119 = vmatprep.subr.bf16.mxu0 0
    %1120 = vmatpush1.bf16.msra.mxu0 %v525
    %1121 = vmatprep.subr.bf16.mxu0 0
    %1122 = vmatpush1.bf16.msra.mxu0 0
    %1123 = vmatprep.subr.bf16.mxu0 0
    %1124 = vmatpush1.bf16.msra.mxu0 0
    %1125 = vmatprep.subr.bf16.mxu0 0
    %1126 = vmatpush1.bf16.msra.mxu0 0
    %1127 = vmatprep.subr.bf16.mxu0 0
    %1128 = vmatpush1.bf16.msra.mxu0 0
    %1129 = vmatprep.subr.bf16.mxu0 0
    %1130 = vmatpush1.bf16.msra.mxu0 0
    %1131 = vmatprep.subr.bf16.mxu0 0
    %1132 = vmatpush1.bf16.msra.mxu0 0
    %1133 = vmatprep.subr.bf16.mxu0 0
    %1134 = vmatpush1.bf16.msra.mxu0 0
    %1135 = vmatprep.subr.bf16.mxu0 0
    %1136 = vmatpush1.bf16.msra.mxu0 0
    %1137 = vmatprep.subr.bf16.mxu0 0
    %1138 = vmatpush1.bf16.msra.mxu0 0
    %1139 = vmatprep.subr.bf16.mxu0 0
    %1140 = vmatpush1.bf16.msra.mxu0 0
    %1141 = vmatprep.subr.bf16.mxu0 0
    %1142 = vmatpush1.bf16.msra.mxu0 0
    %1143 = vmatprep.subr.bf16.mxu0 0
    %1144 = vmatpush1.bf16.msra.mxu0 0
    %1145 = vmatprep.subr.bf16.mxu0 0
    %1146 = vmatpush1.bf16.msra.mxu0 0
    %1147 = vmatprep.subr.bf16.mxu0 0
    %1148 = vmatpush1.bf16.msra.mxu0 0
    %1149 = vmatprep.mubr.bf16.mxu0 0
    %1150 = vmatmul.mubr.bf16.gmra.mrb[0].mxu0 %v1115
    %v1151 = vpop.f32.mrb[0].mxu0
    %v1152 = vadd.f32 0.0, %v1151
    %v1153 = vpop.f32.mrb[0].mxu0
    %v1154 = vpop.f32.mrb[0].mxu0
    %v1155 = vpop.f32.mrb[0].mxu0
    %1156 = vdwg.mxu0
    %1157 = vmatprep.subr.bf16.mxu0 0
    %1158 = vmatpush1.bf16.msra.mxu0 %v579
    %1159 = vmatprep.subr.bf16.mxu0 0
    %1160 = vmatpush1.bf16.msra.mxu0 %v580
    %1161 = vmatprep.subr.bf16.mxu0 0
    %1162 = vmatpush1.bf16.msra.mxu0 0
    %1163 = vmatprep.subr.bf16.mxu0 0
    %1164 = vmatpush1.bf16.msra.mxu0 0
    %1165 = vmatprep.subr.bf16.mxu0 0
    %1166 = vmatpush1.bf16.msra.mxu0 0
    %1167 = vmatprep.subr.bf16.mxu0 0
    %1168 = vmatpush1.bf16.msra.mxu0 0
    %1169 = vmatprep.subr.bf16.mxu0 0
    %1170 = vmatpush1.bf16.msra.mxu0 0
    %1171 = vmatprep.subr.bf16.mxu0 0
    %1172 = vmatpush1.bf16.msra.mxu0 0
    %1173 = vmatprep.subr.bf16.mxu0 0
    %1174 = vmatpush1.bf16.msra.mxu0 0
    %1175 = vmatprep.subr.bf16.mxu0 0
    %1176 = vmatpush1.bf16.msra.mxu0 0
    %1177 = vmatprep.subr.bf16.mxu0 0
    %1178 = vmatpush1.bf16.msra.mxu0 0
    %1179 = vmatprep.subr.bf16.mxu0 0
    %1180 = vmatpush1.bf16.msra.mxu0 0
    %1181 = vmatprep.subr.bf16.mxu0 0
    %1182 = vmatpush1.bf16.msra.mxu0 0
    %1183 = vmatprep.subr.bf16.mxu0 0
    %1184 = vmatpush1.bf16.msra.mxu0 0
    %1185 = vmatprep.subr.bf16.mxu0 0
    %1186 = vmatpush1.bf16.msra.mxu0 0
    %1187 = vmatprep.subr.bf16.mxu0 0
    %1188 = vmatpush1.bf16.msra.mxu0 0
    %1189 = vmatprep.mubr.bf16.mxu0 0
    %1190 = vmatmul.mubr.bf16.gmra.mrb[0].mxu0 %v1040
    %v1191 = vpop.f32.mrb[0].mxu0
    %v1192 = vadd.f32 %v1152, %v1191
    %v1193 = vpop.f32.mrb[0].mxu0
    %v1194 = vpop.f32.mrb[0].mxu0
    %v1195 = vpop.f32.mrb[0].mxu0
    %1196 = vdwg.mxu0
    %v1197 = vadd.f32 %v1192, %v627
    %v1198 = vxor.u32 %v1197, 2147483648
    %v1199 = vmul.f32 %v1198, 1.442695
    %v1200 = vpow.pop %v1199
    %v1201 = vadd.f32 %v1200, 1.0
    %v1202 = vrcp.pop %v1201
    %v1203 = vmul.f32 1.0, %v1202
    %v1204 = vmul.f32 %v1203, 2.0
    %v1205 = vsub.f32 %v1204, 1.0
    %v1206 = vmul.f32 %v1203, %v1028
    %1208 = vrot.lane.b32.xlu0 %v1205, 64
    %v1209 = vpop.permute.xlu0 %1208
    %v1211 = vmul.f32 %v1203, %v1209
    %1213 = vrot.lane.b32.xlu0 %v1211, 32
    %v1214 = vpop.permute.xlu0 %1213
    %v1216 = vadd.f32 %v1206, %v1214
    %v1217 = vtanh.pop %v1216
    %1219 = vrot.lane.b32.xlu0 %v1217, 64
    %v1220 = vpop.permute.xlu0 %1219
    %v1222 = vmul.f32 %v1203, %v1220
    %v1223 = vpack.c.bf16 %v1109, %v1109
    %1225 = vrot.lane.b32.xlu0 %v1223, 32
    %v1226 = vpop.permute.xlu0 %1225
    %v1228 = vsel %vm245, %v1226, 0
    %1230 = vmatprep.subr.bf16.mxu0 0
    %1231 = vmatpush1.bf16.msra.mxu0 %v362
    %1232 = vmatprep.subr.bf16.mxu0 0
    %1233 = vmatpush1.bf16.msra.mxu0 %v363
    %1234 = vmatprep.subr.bf16.mxu0 0
    %1235 = vmatpush1.bf16.msra.mxu0 0
    %1236 = vmatprep.subr.bf16.mxu0 0
    %1237 = vmatpush1.bf16.msra.mxu0 0
    %1238 = vmatprep.subr.bf16.mxu0 0
    %1239 = vmatpush1.bf16.msra.mxu0 0
    %1240 = vmatprep.subr.bf16.mxu0 0
    %1241 = vmatpush1.bf16.msra.mxu0 0
    %1242 = vmatprep.subr.bf16.mxu0 0
    %1243 = vmatpush1.bf16.msra.mxu0 0
    %1244 = vmatprep.subr.bf16.mxu0 0
    %1245 = vmatpush1.bf16.msra.mxu0 0
    %1246 = vmatprep.subr.bf16.mxu0 0
    %1247 = vmatpush1.bf16.msra.mxu0 0
    %1248 = vmatprep.subr.bf16.mxu0 0
    %1249 = vmatpush1.bf16.msra.mxu0 0
    %1250 = vmatprep.subr.bf16.mxu0 0
    %1251 = vmatpush1.bf16.msra.mxu0 0
    %1252 = vmatprep.subr.bf16.mxu0 0
    %1253 = vmatpush1.bf16.msra.mxu0 0
    %1254 = vmatprep.subr.bf16.mxu0 0
    %1255 = vmatpush1.bf16.msra.mxu0 0
    %1256 = vmatprep.subr.bf16.mxu0 0
    %1257 = vmatpush1.bf16.msra.mxu0 0
    %1258 = vmatprep.subr.bf16.mxu0 0
    %1259 = vmatpush1.bf16.msra.mxu0 0
    %1260 = vmatprep.subr.bf16.mxu0 0
    %1261 = vmatpush1.bf16.msra.mxu0 0
    %1262 = vmatprep.mubr.bf16.mxu0 0
    %1263 = vmatmul.mubr.bf16.gmra.mrb[0].mxu0 %v1228
    %v1264 = vpop.f32.mrb[0].mxu0
    %v1265 = vadd.f32 0.0, %v1264
    %v1266 = vpop.f32.mrb[0].mxu0
    %v1267 = vpop.f32.mrb[0].mxu0
    %v1268 = vpop.f32.mrb[0].mxu0
    %1269 = vdwg.mxu0
    %s1270 = scalar_lea.vmem [#allocation2], 40
    %v1271 = vld [vmem:[%s1270] sm:$0xff]
    %v1272 = vadd.f32 %v1271, %v1265
    %v1273 = vxor.u32 %v1272, 2147483648
    %v1274 = vmul.f32 %v1273, 1.442695
    %v1275 = vpow.pop %v1274
    %v1276 = vadd.f32 %v1275, 1.0
    %v1277 = vrcp.pop %v1276
    %v1278 = vmul.f32 1.0, %v1277
    %v1279 = vmul.f32 %v1278, 2.0
    %v1280 = vsub.f32 %v1279, 1.0
    %v1281 = vmul.f32 %v1278, %v1103
    %1283 = vrot.lane.b32.xlu0 %v1280, 64
    %v1284 = vpop.permute.xlu0 %1283
    %v1286 = vmul.f32 %v1278, %v1284
    %1288 = vrot.lane.b32.xlu0 %v1286, 32
    %v1289 = vpop.permute.xlu0 %1288
    %v1291 = vadd.f32 %v1281, %v1289
    %v1292 = vtanh.pop %v1291
    %1294 = vrot.lane.b32.xlu0 %v1292, 64
    %v1295 = vpop.permute.xlu0 %1294
    %v1297 = vmul.f32 %v1278, %v1295
    %v1298 = vpack.c.bf16 %v1222, %v1222
    %1300 = vrot.lane.b32.xlu0 %v1298, 32
    %v1301 = vpop.permute.xlu0 %1300
    %v1303 = vsel %vm245, %v1301, 0
    %1305 = vmatprep.subr.bf16.mxu0 0
    %1306 = vmatpush1.bf16.msra.mxu0 %v524
    %1307 = vmatprep.subr.bf16.mxu0 0
    %1308 = vmatpush1.bf16.msra.mxu0 %v525
    %1309 = vmatprep.subr.bf16.mxu0 0
    %1310 = vmatpush1.bf16.msra.mxu0 0
    %1311 = vmatprep.subr.bf16.mxu0 0
    %1312 = vmatpush1.bf16.msra.mxu0 0
    %1313 = vmatprep.subr.bf16.mxu0 0
    %1314 = vmatpush1.bf16.msra.mxu0 0
    %1315 = vmatprep.subr.bf16.mxu0 0
    %1316 = vmatpush1.bf16.msra.mxu0 0
    %1317 = vmatprep.subr.bf16.mxu0 0
    %1318 = vmatpush1.bf16.msra.mxu0 0
    %1319 = vmatprep.subr.bf16.mxu0 0
    %1320 = vmatpush1.bf16.msra.mxu0 0
    %1321 = vmatprep.subr.bf16.mxu0 0
    %1322 = vmatpush1.bf16.msra.mxu0 0
    %1323 = vmatprep.subr.bf16.mxu0 0
    %1324 = vmatpush1.bf16.msra.mxu0 0
    %1325 = vmatprep.subr.bf16.mxu0 0
    %1326 = vmatpush1.bf16.msra.mxu0 0
    %1327 = vmatprep.subr.bf16.mxu0 0
    %1328 = vmatpush1.bf16.msra.mxu0 0
    %1329 = vmatprep.subr.bf16.mxu0 0
    %1330 = vmatpush1.bf16.msra.mxu0 0
    %1331 = vmatprep.subr.bf16.mxu0 0
    %1332 = vmatpush1.bf16.msra.mxu0 0
    %1333 = vmatprep.subr.bf16.mxu0 0
    %1334 = vmatpush1.bf16.msra.mxu0 0
    %1335 = vmatprep.subr.bf16.mxu0 0
    %1336 = vmatpush1.bf16.msra.mxu0 0
    %1337 = vmatprep.mubr.bf16.mxu0 0
    %1338 = vmatmul.mubr.bf16.gmra.mrb[0].mxu0 %v1303
    %v1339 = vpop.f32.mrb[0].mxu0
    %v1340 = vadd.f32 0.0, %v1339
    %v1341 = vpop.f32.mrb[0].mxu0
    %v1342 = vpop.f32.mrb[0].mxu0
    %v1343 = vpop.f32.mrb[0].mxu0
    %1344 = vdwg.mxu0
    %1345 = vmatprep.subr.bf16.mxu0 0
    %1346 = vmatpush1.bf16.msra.mxu0 %v579
    %1347 = vmatprep.subr.bf16.mxu0 0
    %1348 = vmatpush1.bf16.msra.mxu0 %v580
    %1349 = vmatprep.subr.bf16.mxu0 0
    %1350 = vmatpush1.bf16.msra.mxu0 0
    %1351 = vmatprep.subr.bf16.mxu0 0
    %1352 = vmatpush1.bf16.msra.mxu0 0
    %1353 = vmatprep.subr.bf16.mxu0 0
    %1354 = vmatpush1.bf16.msra.mxu0 0
    %1355 = vmatprep.subr.bf16.mxu0 0
    %1356 = vmatpush1.bf16.msra.mxu0 0
    %1357 = vmatprep.subr.bf16.mxu0 0
    %1358 = vmatpush1.bf16.msra.mxu0 0
    %1359 = vmatprep.subr.bf16.mxu0 0
    %1360 = vmatpush1.bf16.msra.mxu0 0
    %1361 = vmatprep.subr.bf16.mxu0 0
    %1362 = vmatpush1.bf16.msra.mxu0 0
    %1363 = vmatprep.subr.bf16.mxu0 0
    %1364 = vmatpush1.bf16.msra.mxu0 0
    %1365 = vmatprep.subr.bf16.mxu0 0
    %1366 = vmatpush1.bf16.msra.mxu0 0
    %1367 = vmatprep.subr.bf16.mxu0 0
    %1368 = vmatpush1.bf16.msra.mxu0 0
    %1369 = vmatprep.subr.bf16.mxu0 0
    %1370 = vmatpush1.bf16.msra.mxu0 0
    %1371 = vmatprep.subr.bf16.mxu0 0
    %1372 = vmatpush1.bf16.msra.mxu0 0
    %1373 = vmatprep.subr.bf16.mxu0 0
    %1374 = vmatpush1.bf16.msra.mxu0 0
    %1375 = vmatprep.subr.bf16.mxu0 0
    %1376 = vmatpush1.bf16.msra.mxu0 0
    %1377 = vmatprep.mubr.bf16.mxu0 0
    %1378 = vmatmul.mubr.bf16.gmra.mrb[0].mxu0 %v1228
    %v1379 = vpop.f32.mrb[0].mxu0
    %v1380 = vadd.f32 %v1340, %v1379
    %v1381 = vpop.f32.mrb[0].mxu0
    %v1382 = vpop.f32.mrb[0].mxu0
    %v1383 = vpop.f32.mrb[0].mxu0
    %1384 = vdwg.mxu0
    %v1385 = vadd.f32 %v1380, %v627
    %v1386 = vxor.u32 %v1385, 2147483648
    %v1387 = vmul.f32 %v1386, 1.442695
    %v1388 = vpow.pop %v1387
    %v1389 = vadd.f32 %v1388, 1.0
    %v1390 = vrcp.pop %v1389
    %v1391 = vmul.f32 1.0, %v1390
    %v1392 = vmul.f32 %v1391, 2.0
    %v1393 = vsub.f32 %v1392, 1.0
    %v1394 = vmul.f32 %v1391, %v1216
    %1396 = vrot.lane.b32.xlu0 %v1393, 64
    %v1397 = vpop.permute.xlu0 %1396
    %v1399 = vmul.f32 %v1391, %v1397
    %1401 = vrot.lane.b32.xlu0 %v1399, 32
    %v1402 = vpop.permute.xlu0 %1401
    %v1404 = vadd.f32 %v1394, %v1402
    %v1405 = vtanh.pop %v1404
    %1407 = vrot.lane.b32.xlu0 %v1405, 64
    %v1408 = vpop.permute.xlu0 %1407
    %v1410 = vmul.f32 %v1391, %v1408
    %v1411 = vpack.c.bf16 %v1297, %v1297
    %1413 = vrot.lane.b32.xlu0 %v1411, 32
    %v1414 = vpop.permute.xlu0 %1413
    %v1416 = vsel %vm245, %v1414, 0
    %1418 = vmatprep.subr.bf16.mxu0 0
    %1419 = vmatpush1.bf16.msra.mxu0 %v362
    %1420 = vmatprep.subr.bf16.mxu0 0
    %1421 = vmatpush1.bf16.msra.mxu0 %v363
    %1422 = vmatprep.subr.bf16.mxu0 0
    %1423 = vmatpush1.bf16.msra.mxu0 0
    %1424 = vmatprep.subr.bf16.mxu0 0
    %1425 = vmatpush1.bf16.msra.mxu0 0
    %1426 = vmatprep.subr.bf16.mxu0 0
    %1427 = vmatpush1.bf16.msra.mxu0 0
    %1428 = vmatprep.subr.bf16.mxu0 0
    %1429 = vmatpush1.bf16.msra.mxu0 0
    %1430 = vmatprep.subr.bf16.mxu0 0
    %1431 = vmatpush1.bf16.msra.mxu0 0
    %1432 = vmatprep.subr.bf16.mxu0 0
    %1433 = vmatpush1.bf16.msra.mxu0 0
    %1434 = vmatprep.subr.bf16.mxu0 0
    %1435 = vmatpush1.bf16.msra.mxu0 0
    %1436 = vmatprep.subr.bf16.mxu0 0
    %1437 = vmatpush1.bf16.msra.mxu0 0
    %1438 = vmatprep.subr.bf16.mxu0 0
    %1439 = vmatpush1.bf16.msra.mxu0 0
    %1440 = vmatprep.subr.bf16.mxu0 0
    %1441 = vmatpush1.bf16.msra.mxu0 0
    %1442 = vmatprep.subr.bf16.mxu0 0
    %1443 = vmatpush1.bf16.msra.mxu0 0
    %1444 = vmatprep.subr.bf16.mxu0 0
    %1445 = vmatpush1.bf16.msra.mxu0 0
    %1446 = vmatprep.subr.bf16.mxu0 0
    %1447 = vmatpush1.bf16.msra.mxu0 0
    %1448 = vmatprep.subr.bf16.mxu0 0
    %1449 = vmatpush1.bf16.msra.mxu0 0
    %1450 = vmatprep.mubr.bf16.mxu0 0
    %1451 = vmatmul.mubr.bf16.gmra.mrb[0].mxu0 %v1416
    %v1452 = vpop.f32.mrb[0].mxu0
    %v1453 = vadd.f32 0.0, %v1452
    %v1454 = vpop.f32.mrb[0].mxu0
    %v1455 = vpop.f32.mrb[0].mxu0
    %v1456 = vpop.f32.mrb[0].mxu0
    %1457 = vdwg.mxu0
    %s1458 = scalar_lea.vmem [#allocation2], 48
    %v1459 = vld [vmem:[%s1458] sm:$0xff]
    %v1460 = vadd.f32 %v1459, %v1453
    %v1461 = vxor.u32 %v1460, 2147483648
    %v1462 = vmul.f32 %v1461, 1.442695
    %v1463 = vpow.pop %v1462
    %v1464 = vadd.f32 %v1463, 1.0
    %v1465 = vrcp.pop %v1464
    %v1466 = vmul.f32 1.0, %v1465
    %v1467 = vmul.f32 %v1466, 2.0
    %v1468 = vsub.f32 %v1467, 1.0
    %v1469 = vmul.f32 %v1466, %v1291
    %1471 = vrot.lane.b32.xlu0 %v1468, 64
    %v1472 = vpop.permute.xlu0 %1471
    %v1474 = vmul.f32 %v1466, %v1472
    %1476 = vrot.lane.b32.xlu0 %v1474, 32
    %v1477 = vpop.permute.xlu0 %1476
    %v1479 = vadd.f32 %v1469, %v1477
    %v1480 = vtanh.pop %v1479
    %1482 = vrot.lane.b32.xlu0 %v1480, 64
    %v1483 = vpop.permute.xlu0 %1482
    %v1485 = vmul.f32 %v1466, %v1483
    %v1486 = vpack.c.bf16 %v1410, %v1410
    %1488 = vrot.lane.b32.xlu0 %v1486, 32
    %v1489 = vpop.permute.xlu0 %1488
    %v1491 = vsel %vm245, %v1489, 0
    %1493 = vmatprep.subr.bf16.mxu0 0
    %1494 = vmatpush1.bf16.msra.mxu0 %v524
    %1495 = vmatprep.subr.bf16.mxu0 0
    %1496 = vmatpush1.bf16.msra.mxu0 %v525
    %1497 = vmatprep.subr.bf16.mxu0 0
    %1498 = vmatpush1.bf16.msra.mxu0 0
    %1499 = vmatprep.subr.bf16.mxu0 0
    %1500 = vmatpush1.bf16.msra.mxu0 0
    %1501 = vmatprep.subr.bf16.mxu0 0
    %1502 = vmatpush1.bf16.msra.mxu0 0
    %1503 = vmatprep.subr.bf16.mxu0 0
    %1504 = vmatpush1.bf16.msra.mxu0 0
    %1505 = vmatprep.subr.bf16.mxu0 0
    %1506 = vmatpush1.bf16.msra.mxu0 0
    %1507 = vmatprep.subr.bf16.mxu0 0
    %1508 = vmatpush1.bf16.msra.mxu0 0
    %1509 = vmatprep.subr.bf16.mxu0 0
    %1510 = vmatpush1.bf16.msra.mxu0 0
    %1511 = vmatprep.subr.bf16.mxu0 0
    %1512 = vmatpush1.bf16.msra.mxu0 0
    %1513 = vmatprep.subr.bf16.mxu0 0
    %1514 = vmatpush1.bf16.msra.mxu0 0
    %1515 = vmatprep.subr.bf16.mxu0 0
    %1516 = vmatpush1.bf16.msra.mxu0 0
    %1517 = vmatprep.subr.bf16.mxu0 0
    %1518 = vmatpush1.bf16.msra.mxu0 0
    %1519 = vmatprep.subr.bf16.mxu0 0
    %1520 = vmatpush1.bf16.msra.mxu0 0
    %1521 = vmatprep.subr.bf16.mxu0 0
    %1522 = vmatpush1.bf16.msra.mxu0 0
    %1523 = vmatprep.subr.bf16.mxu0 0
    %1524 = vmatpush1.bf16.msra.mxu0 0
    %1525 = vmatprep.mubr.bf16.mxu0 0
    %1526 = vmatmul.mubr.bf16.gmra.mrb[0].mxu0 %v1491
    %v1527 = vpop.f32.mrb[0].mxu0
    %v1528 = vadd.f32 0.0, %v1527
    %v1529 = vpop.f32.mrb[0].mxu0
    %v1530 = vpop.f32.mrb[0].mxu0
    %v1531 = vpop.f32.mrb[0].mxu0
    %1532 = vdwg.mxu0
    %1533 = vmatprep.subr.bf16.mxu0 0
    %1534 = vmatpush1.bf16.msra.mxu0 %v579
    %1535 = vmatprep.subr.bf16.mxu0 0
    %1536 = vmatpush1.bf16.msra.mxu0 %v580
    %1537 = vmatprep.subr.bf16.mxu0 0
    %1538 = vmatpush1.bf16.msra.mxu0 0
    %1539 = vmatprep.subr.bf16.mxu0 0
    %1540 = vmatpush1.bf16.msra.mxu0 0
    %1541 = vmatprep.subr.bf16.mxu0 0
    %1542 = vmatpush1.bf16.msra.mxu0 0
    %1543 = vmatprep.subr.bf16.mxu0 0
    %1544 = vmatpush1.bf16.msra.mxu0 0
    %1545 = vmatprep.subr.bf16.mxu0 0
    %1546 = vmatpush1.bf16.msra.mxu0 0
    %1547 = vmatprep.subr.bf16.mxu0 0
    %1548 = vmatpush1.bf16.msra.mxu0 0
    %1549 = vmatprep.subr.bf16.mxu0 0
    %1550 = vmatpush1.bf16.msra.mxu0 0
    %1551 = vmatprep.subr.bf16.mxu0 0
    %1552 = vmatpush1.bf16.msra.mxu0 0
    %1553 = vmatprep.subr.bf16.mxu0 0
    %1554 = vmatpush1.bf16.msra.mxu0 0
    %1555 = vmatprep.subr.bf16.mxu0 0
    %1556 = vmatpush1.bf16.msra.mxu0 0
    %1557 = vmatprep.subr.bf16.mxu0 0
    %1558 = vmatpush1.bf16.msra.mxu0 0
    %1559 = vmatprep.subr.bf16.mxu0 0
    %1560 = vmatpush1.bf16.msra.mxu0 0
    %1561 = vmatprep.subr.bf16.mxu0 0
    %1562 = vmatpush1.bf16.msra.mxu0 0
    %1563 = vmatprep.subr.bf16.mxu0 0
    %1564 = vmatpush1.bf16.msra.mxu0 0
    %1565 = vmatprep.mubr.bf16.mxu0 0
    %1566 = vmatmul.mubr.bf16.gmra.mrb[0].mxu0 %v1416
    %v1567 = vpop.f32.mrb[0].mxu0
    %v1568 = vadd.f32 %v1528, %v1567
    %v1569 = vpop.f32.mrb[0].mxu0
    %v1570 = vpop.f32.mrb[0].mxu0
    %v1571 = vpop.f32.mrb[0].mxu0
    %1572 = vdwg.mxu0
    %v1573 = vadd.f32 %v1568, %v627
    %v1574 = vxor.u32 %v1573, 2147483648
    %v1575 = vmul.f32 %v1574, 1.442695
    %v1576 = vpow.pop %v1575
    %v1577 = vadd.f32 %v1576, 1.0
    %v1578 = vrcp.pop %v1577
    %v1579 = vmul.f32 1.0, %v1578
    %v1580 = vmul.f32 %v1579, 2.0
    %v1581 = vsub.f32 %v1580, 1.0
    %v1582 = vmul.f32 %v1579, %v1404
    %1584 = vrot.lane.b32.xlu0 %v1581, 64
    %v1585 = vpop.permute.xlu0 %1584
    %v1587 = vmul.f32 %v1579, %v1585
    %1589 = vrot.lane.b32.xlu0 %v1587, 32
    %v1590 = vpop.permute.xlu0 %1589
    %v1592 = vadd.f32 %v1582, %v1590
    %v1593 = vtanh.pop %v1592
    %1595 = vrot.lane.b32.xlu0 %v1593, 64
    %v1596 = vpop.permute.xlu0 %1595
    %v1598 = vmul.f32 %v1579, %v1596
    %v1599 = vpack.c.bf16 %v1485, %v1485
    %1601 = vrot.lane.b32.xlu0 %v1599, 32
    %v1602 = vpop.permute.xlu0 %1601
    %v1604 = vsel %vm245, %v1602, 0
    %1606 = vmatprep.subr.bf16.mxu0 0
    %1607 = vmatpush1.bf16.msra.mxu0 %v362
    %1608 = vmatprep.subr.bf16.mxu0 0
    %1609 = vmatpush1.bf16.msra.mxu0 %v363
    %1610 = vmatprep.subr.bf16.mxu0 0
    %1611 = vmatpush1.bf16.msra.mxu0 0
    %1612 = vmatprep.subr.bf16.mxu0 0
    %1613 = vmatpush1.bf16.msra.mxu0 0
    %1614 = vmatprep.subr.bf16.mxu0 0
    %1615 = vmatpush1.bf16.msra.mxu0 0
    %1616 = vmatprep.subr.bf16.mxu0 0
    %1617 = vmatpush1.bf16.msra.mxu0 0
    %1618 = vmatprep.subr.bf16.mxu0 0
    %1619 = vmatpush1.bf16.msra.mxu0 0
    %1620 = vmatprep.subr.bf16.mxu0 0
    %1621 = vmatpush1.bf16.msra.mxu0 0
    %1622 = vmatprep.subr.bf16.mxu0 0
    %1623 = vmatpush1.bf16.msra.mxu0 0
    %1624 = vmatprep.subr.bf16.mxu0 0
    %1625 = vmatpush1.bf16.msra.mxu0 0
    %1626 = vmatprep.subr.bf16.mxu0 0
    %1627 = vmatpush1.bf16.msra.mxu0 0
    %1628 = vmatprep.subr.bf16.mxu0 0
    %1629 = vmatpush1.bf16.msra.mxu0 0
    %1630 = vmatprep.subr.bf16.mxu0 0
    %1631 = vmatpush1.bf16.msra.mxu0 0
    %1632 = vmatprep.subr.bf16.mxu0 0
    %1633 = vmatpush1.bf16.msra.mxu0 0
    %1634 = vmatprep.subr.bf16.mxu0 0
    %1635 = vmatpush1.bf16.msra.mxu0 0
    %1636 = vmatprep.subr.bf16.mxu0 0
    %1637 = vmatpush1.bf16.msra.mxu0 0
    %1638 = vmatprep.mubr.bf16.mxu0 0
    %1639 = vmatmul.mubr.bf16.gmra.mrb[0].mxu0 %v1604
    %v1640 = vpop.f32.mrb[0].mxu0
    %v1641 = vadd.f32 0.0, %v1640
    %v1642 = vpop.f32.mrb[0].mxu0
    %v1643 = vpop.f32.mrb[0].mxu0
    %v1644 = vpop.f32.mrb[0].mxu0
    %1645 = vdwg.mxu0
    %s1646 = scalar_lea.vmem [#allocation2], 56
    %v1647 = vld [vmem:[%s1646] sm:$0xff]
    %v1648 = vadd.f32 %v1647, %v1641
    %v1649 = vxor.u32 %v1648, 2147483648
    %v1650 = vmul.f32 %v1649, 1.442695
    %v1651 = vpow.pop %v1650
    %v1652 = vadd.f32 %v1651, 1.0
    %v1653 = vrcp.pop %v1652
    %v1654 = vmul.f32 1.0, %v1653
    %v1655 = vmul.f32 %v1654, 2.0
    %v1656 = vsub.f32 %v1655, 1.0
    %v1657 = vmul.f32 %v1654, %v1479
    %1659 = vrot.lane.b32.xlu0 %v1656, 64
    %v1660 = vpop.permute.xlu0 %1659
    %v1662 = vmul.f32 %v1654, %v1660
    %1664 = vrot.lane.b32.xlu0 %v1662, 32
    %v1665 = vpop.permute.xlu0 %1664
    %v1667 = vadd.f32 %v1657, %v1665
    %v1668 = vtanh.pop %v1667
    %1670 = vrot.lane.b32.xlu0 %v1668, 64
    %v1671 = vpop.permute.xlu0 %1670
    %v1673 = vmul.f32 %v1654, %v1671
    %v1674 = vpack.c.bf16 %v1598, %v1598
    %1676 = vrot.lane.b32.xlu0 %v1674, 32
    %v1677 = vpop.permute.xlu0 %1676
    %v1679 = vsel %vm245, %v1677, 0
    %1681 = vmatprep.subr.bf16.mxu0 0
    %1682 = vmatpush1.bf16.msra.mxu0 %v524
    %1683 = vmatprep.subr.bf16.mxu0 0
    %1684 = vmatpush1.bf16.msra.mxu0 %v525
    %1685 = vmatprep.subr.bf16.mxu0 0
    %1686 = vmatpush1.bf16.msra.mxu0 0
    %1687 = vmatprep.subr.bf16.mxu0 0
    %1688 = vmatpush1.bf16.msra.mxu0 0
    %1689 = vmatprep.subr.bf16.mxu0 0
    %1690 = vmatpush1.bf16.msra.mxu0 0
    %1691 = vmatprep.subr.bf16.mxu0 0
    %1692 = vmatpush1.bf16.msra.mxu0 0
    %1693 = vmatprep.subr.bf16.mxu0 0
    %1694 = vmatpush1.bf16.msra.mxu0 0
    %1695 = vmatprep.subr.bf16.mxu0 0
    %1696 = vmatpush1.bf16.msra.mxu0 0
    %1697 = vmatprep.subr.bf16.mxu0 0
    %1698 = vmatpush1.bf16.msra.mxu0 0
    %1699 = vmatprep.subr.bf16.mxu0 0
    %1700 = vmatpush1.bf16.msra.mxu0 0
    %1701 = vmatprep.subr.bf16.mxu0 0
    %1702 = vmatpush1.bf16.msra.mxu0 0
    %1703 = vmatprep.subr.bf16.mxu0 0
    %1704 = vmatpush1.bf16.msra.mxu0 0
    %1705 = vmatprep.subr.bf16.mxu0 0
    %1706 = vmatpush1.bf16.msra.mxu0 0
    %1707 = vmatprep.subr.bf16.mxu0 0
    %1708 = vmatpush1.bf16.msra.mxu0 0
    %1709 = vmatprep.subr.bf16.mxu0 0
    %1710 = vmatpush1.bf16.msra.mxu0 0
    %1711 = vmatprep.subr.bf16.mxu0 0
    %1712 = vmatpush1.bf16.msra.mxu0 0
    %1713 = vmatprep.mubr.bf16.mxu0 0
    %1714 = vmatmul.mubr.bf16.gmra.mrb[0].mxu0 %v1679
    %v1715 = vpop.f32.mrb[0].mxu0
    %v1716 = vadd.f32 0.0, %v1715
    %v1717 = vpop.f32.mrb[0].mxu0
    %v1718 = vpop.f32.mrb[0].mxu0
    %v1719 = vpop.f32.mrb[0].mxu0
    %1720 = vdwg.mxu0
    %1721 = vmatprep.subr.bf16.mxu0 0
    %1722 = vmatpush1.bf16.msra.mxu0 %v579
    %1723 = vmatprep.subr.bf16.mxu0 0
    %1724 = vmatpush1.bf16.msra.mxu0 %v580
    %1725 = vmatprep.subr.bf16.mxu0 0
    %1726 = vmatpush1.bf16.msra.mxu0 0
    %1727 = vmatprep.subr.bf16.mxu0 0
    %1728 = vmatpush1.bf16.msra.mxu0 0
    %1729 = vmatprep.subr.bf16.mxu0 0
    %1730 = vmatpush1.bf16.msra.mxu0 0
    %1731 = vmatprep.subr.bf16.mxu0 0
    %1732 = vmatpush1.bf16.msra.mxu0 0
    %1733 = vmatprep.subr.bf16.mxu0 0
    %1734 = vmatpush1.bf16.msra.mxu0 0
    %1735 = vmatprep.subr.bf16.mxu0 0
    %1736 = vmatpush1.bf16.msra.mxu0 0
    %1737 = vmatprep.subr.bf16.mxu0 0
    %1738 = vmatpush1.bf16.msra.mxu0 0
    %1739 = vmatprep.subr.bf16.mxu0 0
    %1740 = vmatpush1.bf16.msra.mxu0 0
    %1741 = vmatprep.subr.bf16.mxu0 0
    %1742 = vmatpush1.bf16.msra.mxu0 0
    %1743 = vmatprep.subr.bf16.mxu0 0
    %1744 = vmatpush1.bf16.msra.mxu0 0
    %1745 = vmatprep.subr.bf16.mxu0 0
    %1746 = vmatpush1.bf16.msra.mxu0 0
    %1747 = vmatprep.subr.bf16.mxu0 0
    %1748 = vmatpush1.bf16.msra.mxu0 0
    %1749 = vmatprep.subr.bf16.mxu0 0
    %1750 = vmatpush1.bf16.msra.mxu0 0
    %1751 = vmatprep.subr.bf16.mxu0 0
    %1752 = vmatpush1.bf16.msra.mxu0 0
    %1753 = vmatprep.mubr.bf16.mxu0 0
    %1754 = vmatmul.mubr.bf16.gmra.mrb[0].mxu0 %v1604
    %v1755 = vpop.f32.mrb[0].mxu0
    %v1756 = vadd.f32 %v1716, %v1755
    %v1757 = vpop.f32.mrb[0].mxu0
    %v1758 = vpop.f32.mrb[0].mxu0
    %v1759 = vpop.f32.mrb[0].mxu0
    %1760 = vdwg.mxu0
    %v1761 = vadd.f32 %v1756, %v627
    %v1762 = vxor.u32 %v1761, 2147483648
    %v1763 = vmul.f32 %v1762, 1.442695
    %v1764 = vpow.pop %v1763
    %v1765 = vadd.f32 %v1764, 1.0
    %v1766 = vrcp.pop %v1765
    %v1767 = vmul.f32 1.0, %v1766
    %v1768 = vmul.f32 %v1767, 2.0
    %v1769 = vsub.f32 %v1768, 1.0
    %v1770 = vmul.f32 %v1767, %v1592
    %1772 = vrot.lane.b32.xlu0 %v1769, 64
    %v1773 = vpop.permute.xlu0 %1772
    %v1775 = vmul.f32 %v1767, %v1773
    %1777 = vrot.lane.b32.xlu0 %v1775, 32
    %v1778 = vpop.permute.xlu0 %1777
    %v1780 = vadd.f32 %v1770, %v1778
    %v1781 = vtanh.pop %v1780
    %1783 = vrot.lane.b32.xlu0 %v1781, 64
    %v1784 = vpop.permute.xlu0 %1783
    %v1786 = vmul.f32 %v1767, %v1784
    %v1787 = vpack.c.bf16 %v1786, %v1786
    %1789 = vrot.lane.b32.xlu0 %v1787, 32
    %v1790 = vpop.permute.xlu0 %1789
    %v1792 = vsel %vm245, %v1790, 0
    %1794 = vmatprep.subr.bf16.mxu0 0
    %1795 = vmatpush1.bf16.msra.mxu0 %v524
    %1796 = vmatprep.subr.bf16.mxu0 0
    %1797 = vmatpush1.bf16.msra.mxu0 %v525
    %1798 = vmatprep.subr.bf16.mxu0 0
    %1799 = vmatpush1.bf16.msra.mxu0 0
    %1800 = vmatprep.subr.bf16.mxu0 0
    %1801 = vmatpush1.bf16.msra.mxu0 0
    %1802 = vmatprep.subr.bf16.mxu0 0
    %1803 = vmatpush1.bf16.msra.mxu0 0
    %1804 = vmatprep.subr.bf16.mxu0 0
    %1805 = vmatpush1.bf16.msra.mxu0 0
    %1806 = vmatprep.subr.bf16.mxu0 0
    %1807 = vmatpush1.bf16.msra.mxu0 0
    %1808 = vmatprep.subr.bf16.mxu0 0
    %1809 = vmatpush1.bf16.msra.mxu0 0
    %1810 = vmatprep.subr.bf16.mxu0 0
    %1811 = vmatpush1.bf16.msra.mxu0 0
    %1812 = vmatprep.subr.bf16.mxu0 0
    %1813 = vmatpush1.bf16.msra.mxu0 0
    %1814 = vmatprep.subr.bf16.mxu0 0
    %1815 = vmatpush1.bf16.msra.mxu0 0
    %1816 = vmatprep.subr.bf16.mxu0 0
    %1817 = vmatpush1.bf16.msra.mxu0 0
    %1818 = vmatprep.subr.bf16.mxu0 0
    %1819 = vmatpush1.bf16.msra.mxu0 0
    %1820 = vmatprep.subr.bf16.mxu0 0
    %1821 = vmatpush1.bf16.msra.mxu0 0
    %1822 = vmatprep.subr.bf16.mxu0 0
    %1823 = vmatpush1.bf16.msra.mxu0 0
    %1824 = vmatprep.subr.bf16.mxu0 0
    %1825 = vmatpush1.bf16.msra.mxu0 0
    %1826 = vmatprep.mubr.bf16.mxu0 0
    %1827 = vmatmul.mubr.bf16.gmra.mrb[0].mxu0 %v1792
    %v1828 = vpop.f32.mrb[0].mxu0
    %v1829 = vadd.f32 0.0, %v1828
    %v1830 = vpop.f32.mrb[0].mxu0
    %v1831 = vpop.f32.mrb[0].mxu0
    %v1832 = vpop.f32.mrb[0].mxu0
    %1833 = vdwg.mxu0
    %v1834 = vpack.c.bf16 %v1673, %v1673
    %1836 = vrot.lane.b32.xlu0 %v1834, 32
    %v1837 = vpop.permute.xlu0 %1836
    %v1839 = vsel %vm245, %v1837, 0
    %1841 = vmatprep.subr.bf16.mxu0 0
    %1842 = vmatpush1.bf16.msra.mxu0 %v579
    %1843 = vmatprep.subr.bf16.mxu0 0
    %1844 = vmatpush1.bf16.msra.mxu0 %v580
    %1845 = vmatprep.subr.bf16.mxu0 0
    %1846 = vmatpush1.bf16.msra.mxu0 0
    %1847 = vmatprep.subr.bf16.mxu0 0
    %1848 = vmatpush1.bf16.msra.mxu0 0
    %1849 = vmatprep.subr.bf16.mxu0 0
    %1850 = vmatpush1.bf16.msra.mxu0 0
    %1851 = vmatprep.subr.bf16.mxu0 0
    %1852 = vmatpush1.bf16.msra.mxu0 0
    %1853 = vmatprep.subr.bf16.mxu0 0
    %1854 = vmatpush1.bf16.msra.mxu0 0
    %1855 = vmatprep.subr.bf16.mxu0 0
    %1856 = vmatpush1.bf16.msra.mxu0 0
    %1857 = vmatprep.subr.bf16.mxu0 0
    %1858 = vmatpush1.bf16.msra.mxu0 0
    %1859 = vmatprep.subr.bf16.mxu0 0
    %1860 = vmatpush1.bf16.msra.mxu0 0
    %1861 = vmatprep.subr.bf16.mxu0 0
    %1862 = vmatpush1.bf16.msra.mxu0 0
    %1863 = vmatprep.subr.bf16.mxu0 0
    %1864 = vmatpush1.bf16.msra.mxu0 0
    %1865 = vmatprep.subr.bf16.mxu0 0
    %1866 = vmatpush1.bf16.msra.mxu0 0
    %1867 = vmatprep.subr.bf16.mxu0 0
    %1868 = vmatpush1.bf16.msra.mxu0 0
    %1869 = vmatprep.subr.bf16.mxu0 0
    %1870 = vmatpush1.bf16.msra.mxu0 0
    %1871 = vmatprep.subr.bf16.mxu0 0
    %1872 = vmatpush1.bf16.msra.mxu0 0
    %1873 = vmatprep.mubr.bf16.mxu0 0
    %1874 = vmatmul.mubr.bf16.gmra.mrb[0].mxu0 %v1839
    %v1875 = vpop.f32.mrb[0].mxu0
    %v1876 = vadd.f32 %v1829, %v1875
    %v1877 = vpop.f32.mrb[0].mxu0
    %v1878 = vpop.f32.mrb[0].mxu0
    %v1879 = vpop.f32.mrb[0].mxu0
    %1880 = vdwg.mxu0
    %v1881 = vadd.f32 %v1876, %v627
    %v1882 = vxor.u32 %v1881, 2147483648
    %v1883 = vmul.f32 %v1882, 1.442695
    %v1884 = vpow.pop %v1883
    %v1885 = vadd.f32 %v1884, 1.0
    %v1886 = vrcp.pop %v1885
    %v1887 = vmul.f32 1.0, %v1886
    %v1888 = vmul.f32 %v1887, 2.0
    %v1889 = vsub.f32 %v1888, 1.0
    %v1890 = vmul.f32 %v1887, %v1780
    %1892 = vrot.lane.b32.xlu0 %v1889, 64
    %v1893 = vpop.permute.xlu0 %1892
    %v1895 = vmul.f32 %v1887, %v1893
    %1897 = vrot.lane.b32.xlu0 %v1895, 32
    %v1898 = vpop.permute.xlu0 %1897
    %v1900 = vadd.f32 %v1890, %v1898
    %v1901 = vtanh.pop %v1900
    %1903 = vrot.lane.b32.xlu0 %v1901, 64
    %v1904 = vpop.permute.xlu0 %1903
    %v1906 = vmul.f32 %v1887, %v1904
    %1908 = vrot.lane.b32.xlu0 %v1673, 32
    %v1909 = vpop.permute.xlu0 %1908
    %1911 = vst.msk [vmem:[#allocation11] sm:$0xff] %vm245, %v1909
    %1913 = vrot.lane.b32.xlu0 %v1667, 96
    %v1914 = vpop.permute.xlu0 %1913
    %1916 = vst.msk [vmem:[#allocation12] sm:$0xff] %vm245, %v1914
    %1918 = vrot.lane.b32.xlu0 %v1906, 32
    %v1919 = vpop.permute.xlu0 %1918
    %s1921 = scalar_lea.vmem [#allocation11], 8
    %1922 = vst.msk [vmem:[%s1921] sm:$0xff] %vm245, %v1919
    %1924 = vrot.lane.b32.xlu0 %v1900, 96
    %v1925 = vpop.permute.xlu0 %1924
    %s1927 = scalar_lea.vmem [#allocation12], 8
    %1928 = vst.msk [vmem:[%s1927] sm:$0xff] %vm245, %v1925
    %v1929 = vpack.c.bf16 %v1906, %v1906
    %v1930 = vld [vmem:[%s6] sm:$0xf]
    %v1931 = vld [vmem:[%s6 + $0x4] sm:$0xf]
    %v1932 = vld [vmem:[%s6 + $0x8] sm:$0xf]
    %v1933 = vld [vmem:[%s6 + $0xc] sm:$0xf]
    %v1934 = vld [vmem:[#allocation8] sm:$0x1]
    %v1936 = vlaneseq
    %v1937 = vshrl.u32 %v1936, 7
    %v1938 = vsub.s32 0, %v1937
    %v1939 = vrot.slane %v1934, %v1938
    %1942 = vrot.lane.b32.xlu0 %v1929, 32
    %v1943 = vpop.permute.xlu0 %1942
    %v1948 = vunpack.c.l.b16 %v1930
    %v1949 = vunpack.c.l.b16 %v1931
    %v1950 = vunpack.c.l.b16 %v1932
    %v1951 = vunpack.c.l.b16 %v1933
    %v1952 = vpack.c.b16 %v1949, %v1948
    %v1953 = vpack.c.b16 %v1951, %v1950
    %v1957 = vsel %vm245, %v1943, 0
    %1959 = vmatprep.subr.bf16.mxu0 0
    %1960 = vmatpush1.bf16.msra.mxu0 %v1952
    %1961 = vmatprep.subr.bf16.mxu0 0
    %1962 = vmatpush1.bf16.msra.mxu0 %v1953
    %1963 = vmatprep.subr.bf16.mxu0 0
    %1964 = vmatpush1.bf16.msra.mxu0 0
    %1965 = vmatprep.subr.bf16.mxu0 0
    %1966 = vmatpush1.bf16.msra.mxu0 0
    %1967 = vmatprep.subr.bf16.mxu0 0
    %1968 = vmatpush1.bf16.msra.mxu0 0
    %1969 = vmatprep.subr.bf16.mxu0 0
    %1970 = vmatpush1.bf16.msra.mxu0 0
    %1971 = vmatprep.subr.bf16.mxu0 0
    %1972 = vmatpush1.bf16.msra.mxu0 0
    %1973 = vmatprep.subr.bf16.mxu0 0
    %1974 = vmatpush1.bf16.msra.mxu0 0
    %1975 = vmatprep.subr.bf16.mxu0 0
    %1976 = vmatpush1.bf16.msra.mxu0 0
    %1977 = vmatprep.subr.bf16.mxu0 0
    %1978 = vmatpush1.bf16.msra.mxu0 0
    %1979 = vmatprep.subr.bf16.mxu0 0
    %1980 = vmatpush1.bf16.msra.mxu0 0
    %1981 = vmatprep.subr.bf16.mxu0 0
    %1982 = vmatpush1.bf16.msra.mxu0 0
    %1983 = vmatprep.subr.bf16.mxu0 0
    %1984 = vmatpush1.bf16.msra.mxu0 0
    %1985 = vmatprep.subr.bf16.mxu0 0
    %1986 = vmatpush1.bf16.msra.mxu0 0
    %1987 = vmatprep.subr.bf16.mxu0 0
    %1988 = vmatpush1.bf16.msra.mxu0 0
    %1989 = vmatprep.subr.bf16.mxu0 0
    %1990 = vmatpush1.bf16.msra.mxu0 0
    %1991 = vmatprep.mubr.bf16.mxu0 0
    %1992 = vmatmul.mubr.bf16.gmra.mrb[0].mxu0 %v1957
    %v1993 = vpop.f32.mrb[0].mxu0
    %v1994 = vadd.f32 %v1939, %v1993
    %v1995 = vpop.f32.mrb[0].mxu0
    %v1996 = vpop.f32.mrb[0].mxu0
    %v1997 = vpop.f32.mrb[0].mxu0
    %1998 = vdwg.mxu0
    %vm1999 = vcmask 23552
    %2000 = vst.msk [vmem:[%s10] sm:$0xff] %vm1999, %v1994
    // Predicated region
    $region58: #{tpu_custom_call.1} parent=1 // pred_check
      _
    $region59: #{tpu_custom_call.1} parent=1 // pred_check_branch
      %2002 = sbr.rel (0) target = $region61
    $region60: #{tpu_custom_call.1} parent=1 // pred_region
      _
    $region61: #{tpu_custom_call.1} parent=1 // pred_fallthru
      _
    // Predicated region
    $region62: #{tpu_custom_call.1} parent=1 // pred_check
      _
    $region63: #{tpu_custom_call.1} parent=1 // pred_check_branch
      %2004 = sbr.rel (0) target = $region65
    $region64: #{tpu_custom_call.1} parent=1 // pred_region
      %s2006 = ssub.s32 256, 256
      %2007 = vsyncadd [#allocation5], %s2006
      %s2008 = sshll.u32 [#allocation11], 4
      %s2009 = int_to_ptr.vmem [resolvable:$true] %s2008
      %2014 = dma.vmem_to_hbm [thread:$0]  %s2009, 256, %s11, [#allocation5], 128, 128, 8
    $region65: #{tpu_custom_call.1} parent=1 // pred_fallthru
      _
    // Predicated region
    $region66: #{tpu_custom_call.1} parent=1 // pred_check
      _
    $region67: #{tpu_custom_call.1} parent=1 // pred_check_branch
      %2016 = sbr.rel (0) target = $region69
    $region68: #{tpu_custom_call.1} parent=1 // pred_region
      %s2018 = ssub.s32 256, 256
      %2019 = vsyncadd [#allocation13], %s2018
      %s2020 = sshll.u32 [#allocation12], 4
      %s2021 = int_to_ptr.vmem [resolvable:$true] %s2020
      %2026 = dma.vmem_to_hbm [thread:$0]  %s2021, 256, %s12, [#allocation13], 128, 128, 8
    $region69: #{tpu_custom_call.1} parent=1 // pred_fallthru
      _
    // Predicated region
    $region70: #{tpu_custom_call.1} parent=1 // pred_check
      _
    $region71: #{tpu_custom_call.1} parent=1 // pred_check_branch
      %2028 = sbr.rel (0) target = $region73
    $region72: #{tpu_custom_call.1} parent=1 // pred_region
      _
    $region73: #{tpu_custom_call.1} parent=1 // pred_fallthru
      _
    // Predicated region
    $region74: #{tpu_custom_call.1} parent=1 // pred_check
      _
    $region75: #{tpu_custom_call.1} parent=1 // pred_check_branch
      %2030 = sbr.rel (0) target = $region77
    $region76: #{tpu_custom_call.1} parent=1 // pred_region
      %2031 = dma.done [#allocation5], 256
    $region77: #{tpu_custom_call.1} parent=1 // pred_fallthru
      _
    // Predicated region
    $region78: #{tpu_custom_call.1} parent=1 // pred_check
      _
    $region79: #{tpu_custom_call.1} parent=1 // pred_check_branch
      %2033 = sbr.rel (0) target = $region81
    $region80: #{tpu_custom_call.1} parent=1 // pred_region
      %2034 = dma.done [#allocation13], 256
    $region81: #{tpu_custom_call.1} parent=1 // pred_fallthru
      _
    %2035 = vsyncpa [#allocation4], 1
    %2036 = vsyncpa [#allocation7], 1
    %2037 = vsyncpa [#allocation10], 1
    %2038 = vsyncpa [#allocation5], 1
    %2039 = vsyncpa [#allocation13], 1

</llo_original>
